<compile_context>
chip_gen: v6e
topology: v6e:2x2x1
jax: 0.10.0
libtpu: 0.0.40
codegen_flags: <defaults>
</compile_context>

<pallas_src>
import jax
import jax.numpy as jnp
from jax.experimental import pallas as pl
from jax.experimental.pallas import tpu as pltpu

NUM_TAPS = 1025       # num_taps from the training script
WINDOW_SIZE = 256     # window_size (informational; see TODO above)
FS = 44100.0


# ----------------------------------------------------------------------------
# Pallas kernels (halo-reduction banded FIR matmul)
# ----------------------------------------------------------------------------
def fir_kernel(x_ref, b_ref, o_ref, acc_ref):
    """One halo-reduction step: acc += signal_block(i+k) @ band_chunk(k).

    x_ref: (bs, tn) bf16, b_ref: (nk, tn, tn) bf16 resident band matrix,
    o_ref: (bs, tn) output tile, acc_ref: (bs, tn) f32 scratch.
    """
    k = pl.program_id(1)

    @pl.when(k == 0)
    def _init():
        acc_ref[...] = jnp.zeros_like(acc_ref)

    acc_ref[...] += jnp.dot(x_ref[...], b_ref[k],
                            preferred_element_type=jnp.float32)

    @pl.when(k == pl.num_programs(1) - 1)
    def _store():
        o_ref[...] = acc_ref[...].astype(o_ref.dtype)


def fir_tanh_kernel(x_ref, b_ref, d_ref, l_ref, o_ref, acc_ref):
    """Same as fir_kernel but with the fx_processor tanh drive/level nonlinearity
    fused into the k==last epilogue.  d_ref/l_ref: (bs, 1) per-batch controls,
    VMEM resident (constant index_map)."""
    k = pl.program_id(1)

    @pl.when(k == 0)
    def _init():
        acc_ref[...] = jnp.zeros_like(acc_ref)

    acc_ref[...] += jnp.dot(x_ref[...], b_ref[k],
                            preferred_element_type=jnp.float32)

    @pl.when(k == pl.num_programs(1) - 1)
    def _store():
        o_ref[...] = (jnp.tanh(d_ref[...] * acc_ref[...])
                      * l_ref[...]).astype(o_ref.dtype)


# ----------------------------------------------------------------------------
# Banded filter matrix (one per filter, size independent of signal length)
# ----------------------------------------------------------------------------
def _band_matrix(h, tn, nk):
    """B[r, c] = h[c + lpad - r] for 0 <= tap < K else 0, reshaped to (nk, tn, tn)."""
    K = h.shape[0]
    lpad = (nk - 1) * tn
    F = nk * tn
    r = jnp.arange(F)[:, None]
    c = jnp.arange(tn)[None, :]
    tap = c + lpad - r
    B = jnp.where((tap >= 0) & (tap < K), h[jnp.clip(tap, 0, K - 1)], 0.0)
    return B.reshape(nk, tn, tn).astype(jnp.bfloat16)


# ----------------------------------------------------------------------------
# Pallas-backed causal FIR (optionally with fused tanh drive/level)
# ----------------------------------------------------------------------------
def banded_fir(xp, band, *, tn, out_blocks, out_dtype, drive=None, level=None):
    """Causal FIR over `out_blocks` time tiles of width tn.

    xp:   (bs_pad, (out_blocks + nk - 1) * tn) bf16 causally left-padded signal.
    band: (nk, tn, tn) bf16 band matrix.
    Output column p equals the FIR evaluated at xp column p + (nk - 1) * tn.
    If drive/level ((bs_pad, 1) f32) are given, applies tanh(drive*y)*level in the epilogue.
    """
    bs_pad, in_len = xp.shape
    nk = band.shape[0]
    assert in_len == (out_blocks + nk - 1) * tn, (in_len, out_blocks, nk, tn)

    grid = (out_blocks, nk)
    lhs_spec = pl.BlockSpec((bs_pad, tn), lambda i, k: (0, i + k))   # streamed signal blocks
    rhs_spec = pl.BlockSpec((nk, tn, tn), lambda i, k: (0, 0, 0))    # resident band matrix
    out_spec = pl.BlockSpec((bs_pad, tn), lambda i, k: (0, i))       # lane-dense output tile

    in_specs = [lhs_spec, rhs_spec]
    args = [xp, band]
    kernel = fir_kernel
    if drive is not None:
        dl_spec = pl.BlockSpec((bs_pad, 1), lambda i, k: (0, 0))     # resident per-batch scalars
        in_specs = in_specs + [dl_spec, dl_spec]
        args = args + [drive, level]
        kernel = fir_tanh_kernel

    return pl.pallas_call(
        kernel,
        out_shape=jax.ShapeDtypeStruct((bs_pad, out_blocks * tn), out_dtype),
        grid_spec=pltpu.PrefetchScalarGridSpec(
            num_scalar_prefetch=0,
            grid=grid,
            in_specs=in_specs,
            out_specs=out_spec,
            scratch_shapes=[pltpu.VMEM((bs_pad, tn), jnp.float32)],
        ),
        compiler_params=pltpu.CompilerParams(
            dimension_semantics=("parallel", "arbitrary"),
            vmem_limit_bytes=32 * 1024 * 1024),
    )(*args)


# ----------------------------------------------------------------------------
# Parameter setup (deterministic, in-script) — TrainableGraphicEQ FIR design
# ----------------------------------------------------------------------------
def design_graphic_eq_fir(band_gains_db, num_taps=NUM_TAPS, fs=FS):
    """Linear-phase FIR from graphic-EQ band gains via frequency sampling (glue)."""
    n_bands = band_gains_db.shape[0]
    centers = 31.25 * 2.0 ** jnp.arange(n_bands)                 # octave bands
    freqs = jnp.fft.rfftfreq(num_taps, 1.0 / fs)
    g_db = jnp.interp(jnp.log2(jnp.maximum(freqs, 1.0)),
                      jnp.log2(centers), band_gains_db)
    mag = 10.0 ** (g_db / 20.0)
    kbin = jnp.arange(freqs.shape[0])
    delay = (num_taps - 1) / 2.0
    H = mag.astype(jnp.complex64) * jnp.exp(-1j * 2.0 * jnp.pi * kbin * delay / num_taps)
    h = jnp.fft.irfft(H, n=num_taps)
    return (h * jnp.hanning(num_taps)).astype(jnp.float32)


# ----------------------------------------------------------------------------
# Wiener-Hammerstein forward (mirrors the PyTorch module's forward)
# ----------------------------------------------------------------------------
def wiener_hammerstein_forward(x, h_pre, h_post, p_hat, *, tn=512):
    """
    x:      (1, bs, T)  raw audio, like the PyTorch forward signature
    h_pre:  (K,)        pre  graphic-EQ FIR taps (trainable_graphic_eq_pre)
    h_post: (K,)        post graphic-EQ FIR taps (trainable_graphic_eq_post)
    p_hat:  (bs, 2)     normalized DSP controls for the fx_processor
    returns (bs, 1, T)
    """
    _, bs, T = x.shape
    K = max(h_pre.shape[0], h_post.shape[0])

    npad = -(-(K - 1) // tn)          # halo blocks per stage
    lpad = npad * tn
    nk = npad + 1
    nt = -(-T // tn)
    T_pad = nt * tn
    bs_pad = -(-bs // 8) * 8          # >= 8 MXU LHS rows / clean sublane packing

    rows = x.reshape(bs, T).astype(jnp.float32)

    # fx_processor.process_normalized controls (synthesized; see TODO above).
    drive = (1.0 + 9.0 * p_hat[:, 0]).astype(jnp.float32)[:, None]
    level = (0.1 + 0.9 * p_hat[:, 1]).astype(jnp.float32)[:, None]
    drive = jnp.pad(drive, ((0, bs_pad - bs), (0, 0)))
    level = jnp.pad(level, ((0, bs_pad - bs), (0, 0)))

    # Single pad pass over the input: 2*lpad causal zeros (stage-1 halo plus the left pad
    # that stage 2 will need), right pad to a tile multiple, batch pad to bs_pad, bf16.
    xp1 = jnp.pad(rows, ((0, bs_pad - bs), (2 * lpad, T_pad - T))).astype(jnp.bfloat16)

    band_pre = _band_matrix(h_pre, tn, nk)
    band_post = _band_matrix(h_post, tn, nk)

    # Stage 1: pre-EQ FIR + fused tanh drive/level.  Output is bf16 and already left-padded
    # by lpad (those columns are exactly zero -> valid causal history for stage 2).
    y1 = banded_fir(xp1, band_pre, tn=tn, out_blocks=npad + nt,
                    out_dtype=jnp.bfloat16, drive=drive, level=level)

    # Stage 2: post-EQ FIR, f32 output.
    y2 = banded_fir(y1, band_post, tn=tn, out_blocks=nt, out_dtype=jnp.float32)

    return y2[:bs, :T].reshape(bs, 1, T)


# ----------------------------------------------------------------------------
# Pure-JAX reference (same arithmetic precision as the kernels: bf16 operands,
# f32 accumulation) for a correctness check.
# ----------------------------------------------------------------------------
def _fir_ref(x_rows, h):
    bs, T = x_rows.shape
    K = h.shape[0]
    W = T + K - 1
    i = jnp.arange(W)[:, None]
    j = jnp.arange(T)[None, :]
    tap = j + (K - 1) - i
    M = jnp.where((tap >= 0) & (tap < K), h[jnp.clip(tap, 0, K - 1)], 0.0)
    xp = jnp.pad(x_rows, ((0, 0), (K - 1, 0)))
    return xp @ M


def _q(v):  # bf16 round-trip (matches kernel operand precision)
    return v.astype(jnp.bfloat16).astype(jnp.float32)


def wh_reference(x, h_pre, h_post, p_hat):
    _, bs, T = x.shape
    rows = x.reshape(bs, T).astype(jnp.float32)
    drive = (1.0 + 9.0 * p_hat[:, 0])[:, None]
    level = (0.1 + 0.9 * p_hat[:, 1])[:, None]
    y = _fir_ref(_q(rows), _q(h_pre))
    y = jnp.tanh(drive * y) * level
    y = _fir_ref(_q(y), _q(h_post))
    return y.reshape(bs, 1, T)


if __name__ == "__main__":
    key = jax.random.PRNGKey(0)
    k1, k2, k3, k4 = jax.random.split(key, 4)

    bs, T = 2, 1024                               # small deterministic example
    x = 0.1 * jax.random.normal(k1, (1, bs, T), jnp.float32)
    gains_pre = 3.0 * jax.random.normal(k2, (10,), jnp.float32)    # EQ band gains (dB)
    gains_post = 3.0 * jax.random.normal(k3, (10,), jnp.float32)
    p_hat = jax.random.uniform(k4, (bs, 2), jnp.float32)           # NN DSP controls

    h_pre = design_graphic_eq_fir(gains_pre)
    h_post = design_graphic_eq_fir(gains_post)

    fwd = jax.jit(wiener_hammerstein_forward)
    out = fwd(x, h_pre, h_post, p_hat)
    jax.block_until_ready(out)

    assert out.shape == (bs, 1, T) and out.dtype == jnp.float32
    assert bool(jnp.all(jnp.isfinite(out)))

    # Tolerance reflects bf16 matmul operands across a 1025-tap accumulation; the
    # reference quantizes identically (see _q).
    ref = wh_reference(x, h_pre, h_post, p_hat)
    err = float(jnp.max(jnp.abs(out - ref)))
    assert err < 2e-2, f"max abs err vs reference too large: {err}"

    print("KERNEL_OK")
</pallas_src>

<mosaic_0001>
module attributes {stable_mosaic.version = 11 : i64} {
  func.func @fir_tanh_kernel(%arg0: i32, %arg1: i32, %arg2: memref<8x512xbf16, #tpu.memory_space<vmem>>, %arg3: memref<3x512x512xbf16, #tpu.memory_space<vmem>>, %arg4: memref<8x1xf32, #tpu.memory_space<vmem>>, %arg5: memref<8x1xf32, #tpu.memory_space<vmem>>, %arg6: memref<8x512xbf16, #tpu.memory_space<vmem>>, %arg7: memref<8x512xf32, #tpu.memory_space<vmem>>) attributes {dimension_semantics = [#tpu.dimension_semantics<parallel>, #tpu.dimension_semantics<arbitrary>], iteration_bounds = array<i64: 4, 3>, scalar_prefetch = 0 : i64, scratch_operands = 1 : i64, tpu.core_type = #tpu.core_type<tc>, window_params = [{transform_indices = @transform_0, window_bounds = array<i64: 8, 512>}, {pipeline_mode = #tpu.pipeline_mode<synchronous>, transform_indices = @transform_1, window_bounds = array<i64: 3, 512, 512>}, {pipeline_mode = #tpu.pipeline_mode<synchronous>, transform_indices = @transform_2, window_bounds = array<i64: 8, 1>}, {pipeline_mode = #tpu.pipeline_mode<synchronous>, transform_indices = @transform_3, window_bounds = array<i64: 8, 1>}, {transform_indices = @transform_4, window_bounds = array<i64: 8, 512>}]} {
    %c0_i32 = arith.constant 0 : i32
    %0 = arith.cmpi eq, %arg1, %c0_i32 : i32
    %1 = arith.extui %0 : i1 to i32
    %c0_i32_0 = arith.constant 0 : i32
    %2 = arith.cmpi ne, %1, %c0_i32_0 : i32
    scf.if %2 {
      %cst_9 = arith.constant 0.000000e+00 : f32
      %14 = vector.broadcast %cst_9 : f32 to vector<8x512xf32>
      %c0_10 = arith.constant 0 : index
      %c0_11 = arith.constant 0 : index
      %15 = vector.load %arg7[%c0_10, %c0_11] : memref<8x512xf32, #tpu.memory_space<vmem>>, vector<8x512xf32>
      tpu.vector_store %arg7[%c0_10, %c0_11], %14 {strides = array<i32>} : memref<8x512xf32, #tpu.memory_space<vmem>>, vector<8x512xf32>,
    } else {
    }
    %c0 = arith.constant 0 : index
    %c0_1 = arith.constant 0 : index
    %3 = vector.load %arg7[%c0, %c0_1] : memref<8x512xf32, #tpu.memory_space<vmem>>, vector<8x512xf32>
    %c0_2 = arith.constant 0 : index
    %c0_3 = arith.constant 0 : index
    %4 = vector.load %arg2[%c0_2, %c0_3] : memref<8x512xbf16, #tpu.memory_space<vmem>>, vector<8x512xbf16>
    %5 = arith.index_cast %arg1 : i32 to index
    %c0_4 = arith.constant 0 : index
    %c0_5 = arith.constant 0 : index
    %6 = vector.load %arg3[%5, %c0_4, %c0_5] : memref<3x512x512xbf16, #tpu.memory_space<vmem>>, vector<1x512x512xbf16>
    %7 = vector.shape_cast %6 : vector<1x512x512xbf16> to vector<512x512xbf16>
    %cst = arith.constant dense<0.000000e+00> : vector<8x512xf32>
    %8 = tpu.matmul %4, %7, %cst {dimension_numbers = #tpu.dot_dimension_numbers<[1], [0], [0], [1], [0, 0, 1, 1], [], []>} : vector<8x512xbf16>, vector<512x512xbf16>, vector<8x512xf32> -> vector<8x512xf32>
    %9 = arith.addf %3, %8 : vector<8x512xf32>
    %c0_6 = arith.constant 0 : index
    %c0_7 = arith.constant 0 : index
    %10 = vector.load %arg7[%c0_6, %c0_7] : memref<8x512xf32, #tpu.memory_space<vmem>>, vector<8x512xf32>
    tpu.vector_store %arg7[%c0_6, %c0_7], %9 {strides = array<i32>} : memref<8x512xf32, #tpu.memory_space<vmem>>, vector<8x512xf32>,
    %c2_i32 = arith.constant 2 : i32
    %11 = arith.cmpi eq, %arg1, %c2_i32 : i32
    %12 = arith.extui %11 : i1 to i32
    %c0_i32_8 = arith.constant 0 : i32
    %13 = arith.cmpi ne, %12, %c0_i32_8 : i32
    scf.if %13 {
      %c0_9 = arith.constant 0 : index
      %c0_10 = arith.constant 0 : index
      %14 = vector.load %arg4[%c0_9, %c0_10] : memref<8x1xf32, #tpu.memory_space<vmem>>, vector<8x1xf32>
      %c0_11 = arith.constant 0 : index
      %c0_12 = arith.constant 0 : index
      %15 = vector.load %arg7[%c0_11, %c0_12] : memref<8x512xf32, #tpu.memory_space<vmem>>, vector<8x512xf32>
      %16 = vector.broadcast %14 : vector<8x1xf32> to vector<8x512xf32>
      %17 = arith.mulf %16, %15 : vector<8x512xf32>
      %18 = math.tanh %17 : vector<8x512xf32>
      %c0_13 = arith.constant 0 : index
      %c0_14 = arith.constant 0 : index
      %19 = vector.load %arg5[%c0_13, %c0_14] : memref<8x1xf32, #tpu.memory_space<vmem>>, vector<8x1xf32>
      %20 = vector.broadcast %19 : vector<8x1xf32> to vector<8x512xf32>
      %21 = arith.mulf %18, %20 : vector<8x512xf32>
      %22 = arith.truncf %21 : vector<8x512xf32> to vector<8x512xbf16>
      %c0_15 = arith.constant 0 : index
      %c0_16 = arith.constant 0 : index
      %23 = vector.load %arg6[%c0_15, %c0_16] : memref<8x512xbf16, #tpu.memory_space<vmem>>, vector<8x512xbf16>
      tpu.vector_store %arg6[%c0_15, %c0_16], %22 {strides = array<i32>} : memref<8x512xbf16, #tpu.memory_space<vmem>>, vector<8x512xbf16>,
    } else {
    }
    return
  }
  func.func @transform_0(%arg0: i32, %arg1: i32) -> (i32, i32) {
    %0 = arith.addi %arg0, %arg1 : i32
    %c0_i32 = arith.constant 0 : i32
    %c0_i32_0 = arith.constant 0 : i32
    return %c0_i32, %0 : i32, i32
  }
  func.func @transform_1(%arg0: i32, %arg1: i32) -> (i32, i32, i32) {
    %c0_i32 = arith.constant 0 : i32
    %c0_i32_0 = arith.constant 0 : i32
    %c0_i32_1 = arith.constant 0 : i32
    %c0_i32_2 = arith.constant 0 : i32
    return %c0_i32, %c0_i32_0, %c0_i32_1 : i32, i32, i32
  }
  func.func @transform_2(%arg0: i32, %arg1: i32) -> (i32, i32) {
    %c0_i32 = arith.constant 0 : i32
    %c0_i32_0 = arith.constant 0 : i32
    %c0_i32_1 = arith.constant 0 : i32
    return %c0_i32, %c0_i32_0 : i32, i32
  }
  func.func @transform_3(%arg0: i32, %arg1: i32) -> (i32, i32) {
    %c0_i32 = arith.constant 0 : i32
    %c0_i32_0 = arith.constant 0 : i32
    %c0_i32_1 = arith.constant 0 : i32
    return %c0_i32, %c0_i32_0 : i32, i32
  }
  func.func @transform_4(%arg0: i32, %arg1: i32) -> (i32, i32) {
    %c0_i32 = arith.constant 0 : i32
    %c0_i32_0 = arith.constant 0 : i32
    return %c0_i32, %arg0 : i32, i32
  }
}

module attributes {stable_mosaic.version = 11 : i64} {
  func.func @fir_kernel(%arg0: i32, %arg1: i32, %arg2: memref<8x512xbf16, #tpu.memory_space<vmem>>, %arg3: memref<3x512x512xbf16, #tpu.memory_space<vmem>>, %arg4: memref<8x512xf32, #tpu.memory_space<vmem>>, %arg5: memref<8x512xf32, #tpu.memory_space<vmem>>) attributes {dimension_semantics = [#tpu.dimension_semantics<parallel>, #tpu.dimension_semantics<arbitrary>], iteration_bounds = array<i64: 2, 3>, scalar_prefetch = 0 : i64, scratch_operands = 1 : i64, tpu.core_type = #tpu.core_type<tc>, window_params = [{transform_indices = @transform_0, window_bounds = array<i64: 8, 512>}, {pipeline_mode = #tpu.pipeline_mode<synchronous>, transform_indices = @transform_1, window_bounds = array<i64: 3, 512, 512>}, {transform_indices = @transform_2, window_bounds = array<i64: 8, 512>}]} {
    %c0_i32 = arith.constant 0 : i32
    %0 = arith.cmpi eq, %arg1, %c0_i32 : i32
    %1 = arith.extui %0 : i1 to i32
    %c0_i32_0 = arith.constant 0 : i32
    %2 = arith.cmpi ne, %1, %c0_i32_0 : i32
    scf.if %2 {
      %cst_9 = arith.constant 0.000000e+00 : f32
      %14 = vector.broadcast %cst_9 : f32 to vector<8x512xf32>
      %c0_10 = arith.constant 0 : index
      %c0_11 = arith.constant 0 : index
      %15 = vector.load %arg5[%c0_10, %c0_11] : memref<8x512xf32, #tpu.memory_space<vmem>>, vector<8x512xf32>
      tpu.vector_store %arg5[%c0_10, %c0_11], %14 {strides = array<i32>} : memref<8x512xf32, #tpu.memory_space<vmem>>, vector<8x512xf32>,
    } else {
    }
    %c0 = arith.constant 0 : index
    %c0_1 = arith.constant 0 : index
    %3 = vector.load %arg5[%c0, %c0_1] : memref<8x512xf32, #tpu.memory_space<vmem>>, vector<8x512xf32>
    %c0_2 = arith.constant 0 : index
    %c0_3 = arith.constant 0 : index
    %4 = vector.load %arg2[%c0_2, %c0_3] : memref<8x512xbf16, #tpu.memory_space<vmem>>, vector<8x512xbf16>
    %5 = arith.index_cast %arg1 : i32 to index
    %c0_4 = arith.constant 0 : index
    %c0_5 = arith.constant 0 : index
    %6 = vector.load %arg3[%5, %c0_4, %c0_5] : memref<3x512x512xbf16, #tpu.memory_space<vmem>>, vector<1x512x512xbf16>
    %7 = vector.shape_cast %6 : vector<1x512x512xbf16> to vector<512x512xbf16>
    %cst = arith.constant dense<0.000000e+00> : vector<8x512xf32>
    %8 = tpu.matmul %4, %7, %cst {dimension_numbers = #tpu.dot_dimension_numbers<[1], [0], [0], [1], [0, 0, 1, 1], [], []>} : vector<8x512xbf16>, vector<512x512xbf16>, vector<8x512xf32> -> vector<8x512xf32>
    %9 = arith.addf %3, %8 : vector<8x512xf32>
    %c0_6 = arith.constant 0 : index
    %c0_7 = arith.constant 0 : index
    %10 = vector.load %arg5[%c0_6, %c0_7] : memref<8x512xf32, #tpu.memory_space<vmem>>, vector<8x512xf32>
    tpu.vector_store %arg5[%c0_6, %c0_7], %9 {strides = array<i32>} : memref<8x512xf32, #tpu.memory_space<vmem>>, vector<8x512xf32>,
    %c2_i32 = arith.constant 2 : i32
    %11 = arith.cmpi eq, %arg1, %c2_i32 : i32
    %12 = arith.extui %11 : i1 to i32
    %c0_i32_8 = arith.constant 0 : i32
    %13 = arith.cmpi ne, %12, %c0_i32_8 : i32
    scf.if %13 {
      %c0_9 = arith.constant 0 : index
      %c0_10 = arith.constant 0 : index
      %14 = vector.load %arg5[%c0_9, %c0_10] : memref<8x512xf32, #tpu.memory_space<vmem>>, vector<8x512xf32>
      %c0_11 = arith.constant 0 : index
      %c0_12 = arith.constant 0 : index
      %15 = vector.load %arg4[%c0_11, %c0_12] : memref<8x512xf32, #tpu.memory_space<vmem>>, vector<8x512xf32>
      tpu.vector_store %arg4[%c0_11, %c0_12], %14 {strides = array<i32>} : memref<8x512xf32, #tpu.memory_space<vmem>>, vector<8x512xf32>,
    } else {
    }
    return
  }
  func.func @transform_0(%arg0: i32, %arg1: i32) -> (i32, i32) {
    %0 = arith.addi %arg0, %arg1 : i32
    %c0_i32 = arith.constant 0 : i32
    %c0_i32_0 = arith.constant 0 : i32
    return %c0_i32, %0 : i32, i32
  }
  func.func @transform_1(%arg0: i32, %arg1: i32) -> (i32, i32, i32) {
    %c0_i32 = arith.constant 0 : i32
    %c0_i32_0 = arith.constant 0 : i32
    %c0_i32_1 = arith.constant 0 : i32
    %c0_i32_2 = arith.constant 0 : i32
    return %c0_i32, %c0_i32_0, %c0_i32_1 : i32, i32, i32
  }
  func.func @transform_2(%arg0: i32, %arg1: i32) -> (i32, i32) {
    %c0_i32 = arith.constant 0 : i32
    %c0_i32_0 = arith.constant 0 : i32
    return %c0_i32, %arg0 : i32, i32
  }
}

</mosaic_0001>

<llo_original>
// kernel: wiener_hammerstein_forward.3
$region0: #{wiener_hammerstein_forward.3}
  #allocation0 [shape = 'u32[]', space=smem, size = 0x4, offset = 0x4, fixed_abs, tag = 'smem constant byte address 0x4 - core index']
  #allocation1 [shape = 'u32[144,128]{1,0:T(1,128)}', space=vmem, size = 0x12000, scoped, tag = 'internal scratch']
  #allocation2 [shape = 'f32[8,512]{1,0:T(8,128)}', space=vmem, size = 0x4000, scoped, tag = 'scratch operand']
  %s0 = inlined_call_operand.vmem [shape: bf16[8,2048], index: 0, kind: input, shape index: {}]
  %s1 = inlined_call_operand.vmem [shape: bf16[3,512,512], index: 1, kind: input, shape index: {}]
  %s2 = inlined_call_operand.vmem [shape: f32[8,1024], index: 2, kind: output, shape index: {}]
  %s3 = sld [smem:[#allocation0]]
  $region49: #{wiener_hammerstein_forward.3} parent=0
    _
  %s5 = ssub.s32 1, %s3
  %s6 = scalar_select 0, %s5, %s3
  loop: start=0, step=1, limit=8
  $region2: #{wiener_hammerstein_forward.3} parent=0 // loop_pre_header
    _
  $region3: #{wiener_hammerstein_forward.3} parent=0 // loop_header
    %s8 = sphi 0, %s12
    %p9 = scmp.ge.s32.totalorder %s8, 8
    %s15 = sphi 0, %s27
    %s16 = sphi 0, %s23
    %s17 = sphi 0, %s15
    %s18 = sphi 0, %s16
    %s19 = sphi 0, %s17
    %s20 = sphi 0, %s18
    %s32 = sphi 0, %s34
    %s35 = sphi 0, %s32
    %s36 = sphi 0, %s35
    %s52 = sphi 0, %s36
    %s56 = sphi 0, %s56
    %s58 = sphi 0, %s56
    %s59 = sphi 0, %s58
    %s73 = sphi 0, %s59
    %s79 = sphi 0, %s81
    %s82 = sphi 0, %s79
    %s83 = sphi 0, %s82
    %s99 = sphi 0, %s83
  $region4: #{wiener_hammerstein_forward.3} parent=0 // loop_header_branch
    %11 = sbr.rel (%p9) target = $region8
  $region5: #{wiener_hammerstein_forward.3} parent=0 // loop_body
    %s13 = ssub.s32 %s8, 1
    %s14 = ssub.s32 %s8, 2
    %s21 = sadd.s32 1, %s16
    %p22 = scmp.ge.s32.totalorder %s21, 3
    %s23 = scalar_select %p22, 0, %s21
    %s24 = sadd.s32 1, %s15
    %s25 = scalar_select %p22, %s24, %s15
    %p26 = scmp.ge.s32.totalorder %s25, 2
    %s27 = scalar_select %p26, 0, %s25
    %s28 = sadd.s32 %s15, %s16
    %s29 = sadd.s32 %s27, %s23
    %s30 = ssub.s32 %s28, %s29
    %p31 = scmp.eq.s32.totalorder %s30, 0
    %s33 = sadd.s32 %s32, 1
    %s34 = scalar_select %p31, %s32, %s33
    %p37 = pneg %p31
    %p38 = scmp.eq.s32.totalorder %s8, 5
    %p39 = por %p37, %p38
    %p40 = scmp.ne.s32.totalorder %s32, %s35
    %p41 = scmp.eq.s32.totalorder %s8, 0
    %p42 = por %p40, %p41
    %p43 = scmp.ne.s32.totalorder %s32, %s35
    %p44 = scmp.eq.s32.totalorder %s13, 5
    %p45 = por %p43, %p44
    %p46 = scmp.ne.s32.totalorder %s35, %s36
    %p47 = scmp.eq.s32.totalorder %s13, 0
    %p48 = por %p46, %p47
    %p49 = scmp.ne.s32.totalorder %s35, %s36
    %p50 = scmp.eq.s32.totalorder %s14, 5
    %p51 = por %p49, %p50
    %p53 = scmp.ne.s32.totalorder %s36, %s52
    %p54 = scmp.eq.s32.totalorder %s14, 0
    %p55 = por %p53, %p54
    %s57 = sadd.s32 %s56, 1
    %p60 = scmp.eq.s32.totalorder %s8, 5
    %p61 = scmp.ne.s32.totalorder %s56, %s58
    %p62 = scmp.eq.s32.totalorder %s8, 0
    %p63 = por %p61, %p62
    %p64 = scmp.ne.s32.totalorder %s56, %s58
    %p65 = scmp.eq.s32.totalorder %s13, 5
    %p66 = por %p64, %p65
    %p67 = scmp.ne.s32.totalorder %s58, %s59
    %p68 = scmp.eq.s32.totalorder %s13, 0
    %p69 = por %p67, %p68
    %p70 = scmp.ne.s32.totalorder %s58, %s59
    %p71 = scmp.eq.s32.totalorder %s14, 5
    %p72 = por %p70, %p71
    %p74 = scmp.ne.s32.totalorder %s59, %s73
    %p75 = scmp.eq.s32.totalorder %s14, 0
    %p76 = por %p74, %p75
    %s77 = ssub.s32 %s15, %s27
    %p78 = scmp.eq.s32.totalorder %s77, 0
    %s80 = sadd.s32 %s79, 1
    %s81 = scalar_select %p78, %s79, %s80
    %p84 = pneg %p78
    %p85 = scmp.eq.s32.totalorder %s8, 5
    %p86 = por %p84, %p85
    %p87 = scmp.ne.s32.totalorder %s79, %s82
    %p88 = scmp.eq.s32.totalorder %s8, 0
    %p89 = por %p87, %p88
    %p90 = scmp.ne.s32.totalorder %s79, %s82
    %p91 = scmp.eq.s32.totalorder %s13, 5
    %p92 = por %p90, %p91
    %p93 = scmp.ne.s32.totalorder %s82, %s83
    %p94 = scmp.eq.s32.totalorder %s13, 0
    %p95 = por %p93, %p94
    %p96 = scmp.ne.s32.totalorder %s82, %s83
    %p97 = scmp.eq.s32.totalorder %s14, 5
    %p98 = por %p96, %p97
    %p100 = scmp.ne.s32.totalorder %s83, %s99
    %p101 = scmp.eq.s32.totalorder %s14, 0
    %p102 = por %p100, %p101
    %p103 = scmp.le.s32.totalorder 1, %s8
    %p104 = scmp.lt.s32.totalorder %s8, 7
    %p105 = pnand %p103, %p104
    %p106 = pneg %p105
    // Predicated region
    $region9: #{wiener_hammerstein_forward.3} parent=5 // pred_check
      _
    $region10: #{wiener_hammerstein_forward.3} parent=5 // pred_check_branch
      %108 = sbr.rel (%p105) target = $region12
    $region11: #{wiener_hammerstein_forward.3} parent=5 // pred_region
      %s109 = ssub.s32 %s8, 1
      // Predicated region
      $region13: #{wiener_hammerstein_forward.3} parent=11 // pred_check
        %p110 = pneg %p69
      $region14: #{wiener_hammerstein_forward.3} parent=11 // pred_check_branch
        %112 = sbr.rel (%p110) target = $region16
      $region15: #{wiener_hammerstein_forward.3} parent=11 // pred_region
        _
      $region16: #{wiener_hammerstein_forward.3} parent=11 // pred_fallthru
        _
    $region12: #{wiener_hammerstein_forward.3} parent=5 // pred_fallthru
      _
    %p113 = scmp.lt.s32.totalorder %s8, 6
    // Predicated region
    $region17: #{wiener_hammerstein_forward.3} parent=5 // pred_check
      %p114 = pneg %p113
    $region18: #{wiener_hammerstein_forward.3} parent=5 // pred_check_branch
      %116 = sbr.rel (%p114) target = $region20
    $region19: #{wiener_hammerstein_forward.3} parent=5 // pred_region
      // Predicated region
      $region21: #{wiener_hammerstein_forward.3} parent=19 // pred_check
        %p117 = pneg %p42
      $region22: #{wiener_hammerstein_forward.3} parent=19 // pred_check_branch
        %119 = sbr.rel (%p117) target = $region24
      $region23: #{wiener_hammerstein_forward.3} parent=19 // pred_region
        %s120 = sadd.s32 %s15, %s16
        %s121 = smul.u32 4, %s120
        %p122 = scmp.lt.s32.totalorder %s121, 15
        %s123 = scalar_select %p122, %s121, 15
        %s124 = smul.addr %s123, 4
        %s125 = scalar_lea.vmem %s0, %s124
        %s126 = sadd.s32 %s15, %s16
        %s127 = smul.u32 4, %s126
      $region24: #{wiener_hammerstein_forward.3} parent=19 // pred_fallthru
        _
    $region20: #{wiener_hammerstein_forward.3} parent=5 // pred_fallthru
      _
    %p128 = scmp.le.s32.totalorder 1, %s8
    %p129 = scmp.lt.s32.totalorder %s8, 7
    %p130 = pnand %p128, %p129
    %p131 = pneg %p130
    // Predicated region
    $region25: #{wiener_hammerstein_forward.3} parent=5 // pred_check
      _
    $region26: #{wiener_hammerstein_forward.3} parent=5 // pred_check_branch
      %133 = sbr.rel (%p130) target = $region28
    $region27: #{wiener_hammerstein_forward.3} parent=5 // pred_region
      %s134 = ssub.s32 %s8, 1
      %s135 = sadd.s32 %s17, %s18
      %s136 = smul.u32 4, %s135
      %p137 = scmp.lt.s32.totalorder %s136, 15
      %s138 = scalar_select %p137, %s136, 15
      %s139 = smul.addr %s138, 4
      %s140 = scalar_lea.vmem %s0, %s139
      %p141 = pneg %p48
      %p142 = pneg %p45
      %p143 = pneg %p69
      %p144 = pneg %p66
      %p145 = pneg %p95
      %p146 = pneg %p92
      %s147 = smul.u32 4, %s17
      %p148 = scmp.lt.s32.totalorder %s147, 7
      %s149 = scalar_select %p148, %s147, 7
      %s150 = smul.addr %s149, 8
      %s151 = scalar_lea.vmem %s2, %s150
      %s152 = sadd.s32 %s17, %s18
      %s153 = smul.u32 4, %s152
      %p154 = scmp.lt.s32.totalorder %s153, 15
      %s155 = scalar_select %p154, %s153, 15
      %s156 = smul.addr %s155, 4
      %s157 = scalar_lea.vmem %s0, %s156
      %s158 = sadd.s32 %s17, %s18
      %s159 = smul.u32 4, %s158
      %s160 = smul.u32 4, %s17
      %p161 = scmp.lt.s32.totalorder %s160, 7
      %s162 = scalar_select %p161, %s160, 7
      %s163 = smul.addr %s162, 8
      %s164 = scalar_lea.vmem %s2, %s163
      %s165 = smul.u32 4, %s17
      %p166 = scmp.eq.s32.totalorder %s18, 0
      // Predicated region
      $region29: #{wiener_hammerstein_forward.3} parent=27 // pred_check
        %p167 = pneg %p166
      $region30: #{wiener_hammerstein_forward.3} parent=27 // pred_check_branch
        %169 = sbr.rel (%p167) target = $region32
      $region31: #{wiener_hammerstein_forward.3} parent=27 // pred_region
        %170 = vst [vmem:[#allocation2] sm:$0xff] 0.0
        %171 = vst [vmem:[#allocation2 + $0x8] sm:$0xff] 0.0
        %172 = vst [vmem:[#allocation2 + $0x10] sm:$0xff] 0.0
        %173 = vst [vmem:[#allocation2 + $0x18] sm:$0xff] 0.0
      $region32: #{wiener_hammerstein_forward.3} parent=27 // pred_fallthru
        _
      %v174 = vld [vmem:[#allocation2] sm:$0xff]
      %v175 = vld [vmem:[#allocation2 + $0x8] sm:$0xff]
      %v176 = vld [vmem:[#allocation2 + $0x10] sm:$0xff]
      %v177 = vld [vmem:[#allocation2 + $0x18] sm:$0xff]
      %v178 = vld [vmem:[%s157] sm:$0xff]
      %v179 = vld [vmem:[%s157 + $0x8] sm:$0xff]
      %s180 = smul.u32 %s18, 256
      %s181 = smul.addr %s180, 4
      %s182 = scalar_lea.vmem %s1, %s181
      %v183 = vld [vmem:[%s182] sm:$0xff]
      %v184 = vld [vmem:[%s182 + $0x8] sm:$0xff]
      %v185 = vld [vmem:[%s182 + $0x10] sm:$0xff]
      %v186 = vld [vmem:[%s182 + $0x18] sm:$0xff]
      %v187 = vld [vmem:[%s182 + $0x20] sm:$0xff]
      %v188 = vld [vmem:[%s182 + $0x28] sm:$0xff]
      %v189 = vld [vmem:[%s182 + $0x30] sm:$0xff]
      %v190 = vld [vmem:[%s182 + $0x38] sm:$0xff]
      %v191 = vld [vmem:[%s182 + $0x40] sm:$0xff]
      %v192 = vld [vmem:[%s182 + $0x48] sm:$0xff]
      %v193 = vld [vmem:[%s182 + $0x50] sm:$0xff]
      %v194 = vld [vmem:[%s182 + $0x58] sm:$0xff]
      %v195 = vld [vmem:[%s182 + $0x60] sm:$0xff]
      %v196 = vld [vmem:[%s182 + $0x68] sm:$0xff]
      %v197 = vld [vmem:[%s182 + $0x70] sm:$0xff]
      %v198 = vld [vmem:[%s182 + $0x78] sm:$0xff]
      %v199 = vld [vmem:[%s182 + $0x80] sm:$0xff]
      %v200 = vld [vmem:[%s182 + $0x88] sm:$0xff]
      %v201 = vld [vmem:[%s182 + $0x90] sm:$0xff]
      %v202 = vld [vmem:[%s182 + $0x98] sm:$0xff]
      %v203 = vld [vmem:[%s182 + $0xa0] sm:$0xff]
      %v204 = vld [vmem:[%s182 + $0xa8] sm:$0xff]
      %v205 = vld [vmem:[%s182 + $0xb0] sm:$0xff]
      %v206 = vld [vmem:[%s182 + $0xb8] sm:$0xff]
      %v207 = vld [vmem:[%s182 + $0xc0] sm:$0xff]
      %v208 = vld [vmem:[%s182 + $0xc8] sm:$0xff]
      %v209 = vld [vmem:[%s182 + $0xd0] sm:$0xff]
      %v210 = vld [vmem:[%s182 + $0xd8] sm:$0xff]
      %v211 = vld [vmem:[%s182 + $0xe0] sm:$0xff]
      %v212 = vld [vmem:[%s182 + $0xe8] sm:$0xff]
      %v213 = vld [vmem:[%s182 + $0xf0] sm:$0xff]
      %v214 = vld [vmem:[%s182 + $0xf8] sm:$0xff]
      %v215 = vld [vmem:[%s182 + $0x100] sm:$0xff]
      %v216 = vld [vmem:[%s182 + $0x108] sm:$0xff]
      %v217 = vld [vmem:[%s182 + $0x110] sm:$0xff]
      %v218 = vld [vmem:[%s182 + $0x118] sm:$0xff]
      %v219 = vld [vmem:[%s182 + $0x120] sm:$0xff]
      %v220 = vld [vmem:[%s182 + $0x128] sm:$0xff]
      %v221 = vld [vmem:[%s182 + $0x130] sm:$0xff]
      %v222 = vld [vmem:[%s182 + $0x138] sm:$0xff]
      %v223 = vld [vmem:[%s182 + $0x140] sm:$0xff]
      %v224 = vld [vmem:[%s182 + $0x148] sm:$0xff]
      %v225 = vld [vmem:[%s182 + $0x150] sm:$0xff]
      %v226 = vld [vmem:[%s182 + $0x158] sm:$0xff]
      %v227 = vld [vmem:[%s182 + $0x160] sm:$0xff]
      %v228 = vld [vmem:[%s182 + $0x168] sm:$0xff]
      %v229 = vld [vmem:[%s182 + $0x170] sm:$0xff]
      %v230 = vld [vmem:[%s182 + $0x178] sm:$0xff]
      %v231 = vld [vmem:[%s182 + $0x180] sm:$0xff]
      %v232 = vld [vmem:[%s182 + $0x188] sm:$0xff]
      %v233 = vld [vmem:[%s182 + $0x190] sm:$0xff]
      %v234 = vld [vmem:[%s182 + $0x198] sm:$0xff]
      %v235 = vld [vmem:[%s182 + $0x1a0] sm:$0xff]
      %v236 = vld [vmem:[%s182 + $0x1a8] sm:$0xff]
      %v237 = vld [vmem:[%s182 + $0x1b0] sm:$0xff]
      %v238 = vld [vmem:[%s182 + $0x1b8] sm:$0xff]
      %v239 = vld [vmem:[%s182 + $0x1c0] sm:$0xff]
      %v240 = vld [vmem:[%s182 + $0x1c8] sm:$0xff]
      %v241 = vld [vmem:[%s182 + $0x1d0] sm:$0xff]
      %v242 = vld [vmem:[%s182 + $0x1d8] sm:$0xff]
      %v243 = vld [vmem:[%s182 + $0x1e0] sm:$0xff]
      %v244 = vld [vmem:[%s182 + $0x1e8] sm:$0xff]
      %v245 = vld [vmem:[%s182 + $0x1f0] sm:$0xff]
      %v246 = vld [vmem:[%s182 + $0x1f8] sm:$0xff]
      %v247 = vld [vmem:[%s182 + $0x200] sm:$0xff]
      %v248 = vld [vmem:[%s182 + $0x208] sm:$0xff]
      %v249 = vld [vmem:[%s182 + $0x210] sm:$0xff]
      %v250 = vld [vmem:[%s182 + $0x218] sm:$0xff]
      %v251 = vld [vmem:[%s182 + $0x220] sm:$0xff]
      %v252 = vld [vmem:[%s182 + $0x228] sm:$0xff]
      %v253 = vld [vmem:[%s182 + $0x230] sm:$0xff]
      %v254 = vld [vmem:[%s182 + $0x238] sm:$0xff]
      %v255 = vld [vmem:[%s182 + $0x240] sm:$0xff]
      %v256 = vld [vmem:[%s182 + $0x248] sm:$0xff]
      %v257 = vld [vmem:[%s182 + $0x250] sm:$0xff]
      %v258 = vld [vmem:[%s182 + $0x258] sm:$0xff]
      %v259 = vld [vmem:[%s182 + $0x260] sm:$0xff]
      %v260 = vld [vmem:[%s182 + $0x268] sm:$0xff]
      %v261 = vld [vmem:[%s182 + $0x270] sm:$0xff]
      %v262 = vld [vmem:[%s182 + $0x278] sm:$0xff]
      %v263 = vld [vmem:[%s182 + $0x280] sm:$0xff]
      %v264 = vld [vmem:[%s182 + $0x288] sm:$0xff]
      %v265 = vld [vmem:[%s182 + $0x290] sm:$0xff]
      %v266 = vld [vmem:[%s182 + $0x298] sm:$0xff]
      %v267 = vld [vmem:[%s182 + $0x2a0] sm:$0xff]
      %v268 = vld [vmem:[%s182 + $0x2a8] sm:$0xff]
      %v269 = vld [vmem:[%s182 + $0x2b0] sm:$0xff]
      %v270 = vld [vmem:[%s182 + $0x2b8] sm:$0xff]
      %v271 = vld [vmem:[%s182 + $0x2c0] sm:$0xff]
      %v272 = vld [vmem:[%s182 + $0x2c8] sm:$0xff]
      %v273 = vld [vmem:[%s182 + $0x2d0] sm:$0xff]
      %v274 = vld [vmem:[%s182 + $0x2d8] sm:$0xff]
      %v275 = vld [vmem:[%s182 + $0x2e0] sm:$0xff]
      %v276 = vld [vmem:[%s182 + $0x2e8] sm:$0xff]
      %v277 = vld [vmem:[%s182 + $0x2f0] sm:$0xff]
      %v278 = vld [vmem:[%s182 + $0x2f8] sm:$0xff]
      %v279 = vld [vmem:[%s182 + $0x300] sm:$0xff]
      %v280 = vld [vmem:[%s182 + $0x308] sm:$0xff]
      %v281 = vld [vmem:[%s182 + $0x310] sm:$0xff]
      %v282 = vld [vmem:[%s182 + $0x318] sm:$0xff]
      %v283 = vld [vmem:[%s182 + $0x320] sm:$0xff]
      %v284 = vld [vmem:[%s182 + $0x328] sm:$0xff]
      %v285 = vld [vmem:[%s182 + $0x330] sm:$0xff]
      %v286 = vld [vmem:[%s182 + $0x338] sm:$0xff]
      %v287 = vld [vmem:[%s182 + $0x340] sm:$0xff]
      %v288 = vld [vmem:[%s182 + $0x348] sm:$0xff]
      %v289 = vld [vmem:[%s182 + $0x350] sm:$0xff]
      %v290 = vld [vmem:[%s182 + $0x358] sm:$0xff]
      %v291 = vld [vmem:[%s182 + $0x360] sm:$0xff]
      %v292 = vld [vmem:[%s182 + $0x368] sm:$0xff]
      %v293 = vld [vmem:[%s182 + $0x370] sm:$0xff]
      %v294 = vld [vmem:[%s182 + $0x378] sm:$0xff]
      %v295 = vld [vmem:[%s182 + $0x380] sm:$0xff]
      %v296 = vld [vmem:[%s182 + $0x388] sm:$0xff]
      %v297 = vld [vmem:[%s182 + $0x390] sm:$0xff]
      %v298 = vld [vmem:[%s182 + $0x398] sm:$0xff]
      %v299 = vld [vmem:[%s182 + $0x3a0] sm:$0xff]
      %v300 = vld [vmem:[%s182 + $0x3a8] sm:$0xff]
      %v301 = vld [vmem:[%s182 + $0x3b0] sm:$0xff]
      %v302 = vld [vmem:[%s182 + $0x3b8] sm:$0xff]
      %v303 = vld [vmem:[%s182 + $0x3c0] sm:$0xff]
      %v304 = vld [vmem:[%s182 + $0x3c8] sm:$0xff]
      %v305 = vld [vmem:[%s182 + $0x3d0] sm:$0xff]
      %v306 = vld [vmem:[%s182 + $0x3d8] sm:$0xff]
      %v307 = vld [vmem:[%s182 + $0x3e0] sm:$0xff]
      %v308 = vld [vmem:[%s182 + $0x3e8] sm:$0xff]
      %v309 = vld [vmem:[%s182 + $0x3f0] sm:$0xff]
      %v310 = vld [vmem:[%s182 + $0x3f8] sm:$0xff]
      %v313 = vunpack.c.l.b16 %v178
      %v314 = vunpack.c.h.b16 %v178
      %v315 = vunpack.c.l.b16 %v179
      %v316 = vunpack.c.h.b16 %v179
      %v317 = vpack.c.b16 %v313, %v313
      %v318 = vpack.c.b16 %v314, %v314
      %v319 = vpack.c.b16 %v315, %v315
      %v320 = vpack.c.b16 %v316, %v316
      %v453 = vunpack.c.l.b16 %v183
      %v454 = vunpack.c.h.b16 %v183
      %v455 = vunpack.c.l.b16 %v184
      %v456 = vunpack.c.h.b16 %v184
      %v457 = vunpack.c.l.b16 %v185
      %v458 = vunpack.c.h.b16 %v185
      %v459 = vunpack.c.l.b16 %v186
      %v460 = vunpack.c.h.b16 %v186
      %v461 = vunpack.c.l.b16 %v187
      %v462 = vunpack.c.h.b16 %v187
      %v463 = vunpack.c.l.b16 %v188
      %v464 = vunpack.c.h.b16 %v188
      %v465 = vunpack.c.l.b16 %v189
      %v466 = vunpack.c.h.b16 %v189
      %v467 = vunpack.c.l.b16 %v190
      %v468 = vunpack.c.h.b16 %v190
      %v469 = vunpack.c.l.b16 %v191
      %v470 = vunpack.c.h.b16 %v191
      %v471 = vunpack.c.l.b16 %v192
      %v472 = vunpack.c.h.b16 %v192
      %v473 = vunpack.c.l.b16 %v193
      %v474 = vunpack.c.h.b16 %v193
      %v475 = vunpack.c.l.b16 %v194
      %v476 = vunpack.c.h.b16 %v194
      %v477 = vunpack.c.l.b16 %v195
      %v478 = vunpack.c.h.b16 %v195
      %v479 = vunpack.c.l.b16 %v196
      %v480 = vunpack.c.h.b16 %v196
      %v481 = vunpack.c.l.b16 %v197
      %v482 = vunpack.c.h.b16 %v197
      %v483 = vunpack.c.l.b16 %v198
      %v484 = vunpack.c.h.b16 %v198
      %v485 = vunpack.c.l.b16 %v199
      %v486 = vunpack.c.h.b16 %v199
      %v487 = vunpack.c.l.b16 %v200
      %v488 = vunpack.c.h.b16 %v200
      %v489 = vunpack.c.l.b16 %v201
      %v490 = vunpack.c.h.b16 %v201
      %v491 = vunpack.c.l.b16 %v202
      %v492 = vunpack.c.h.b16 %v202
      %v493 = vunpack.c.l.b16 %v203
      %v494 = vunpack.c.h.b16 %v203
      %v495 = vunpack.c.l.b16 %v204
      %v496 = vunpack.c.h.b16 %v204
      %v497 = vunpack.c.l.b16 %v205
      %v498 = vunpack.c.h.b16 %v205
      %v499 = vunpack.c.l.b16 %v206
      %v500 = vunpack.c.h.b16 %v206
      %v501 = vunpack.c.l.b16 %v207
      %v502 = vunpack.c.h.b16 %v207
      %v503 = vunpack.c.l.b16 %v208
      %v504 = vunpack.c.h.b16 %v208
      %v505 = vunpack.c.l.b16 %v209
      %v506 = vunpack.c.h.b16 %v209
      %v507 = vunpack.c.l.b16 %v210
      %v508 = vunpack.c.h.b16 %v210
      %v509 = vunpack.c.l.b16 %v211
      %v510 = vunpack.c.h.b16 %v211
      %v511 = vunpack.c.l.b16 %v212
      %v512 = vunpack.c.h.b16 %v212
      %v513 = vunpack.c.l.b16 %v213
      %v514 = vunpack.c.h.b16 %v213
      %v515 = vunpack.c.l.b16 %v214
      %v516 = vunpack.c.h.b16 %v214
      %v517 = vunpack.c.l.b16 %v215
      %v518 = vunpack.c.h.b16 %v215
      %v519 = vunpack.c.l.b16 %v216
      %v520 = vunpack.c.h.b16 %v216
      %v521 = vunpack.c.l.b16 %v217
      %v522 = vunpack.c.h.b16 %v217
      %v523 = vunpack.c.l.b16 %v218
      %v524 = vunpack.c.h.b16 %v218
      %v525 = vunpack.c.l.b16 %v219
      %v526 = vunpack.c.h.b16 %v219
      %v527 = vunpack.c.l.b16 %v220
      %v528 = vunpack.c.h.b16 %v220
      %v529 = vunpack.c.l.b16 %v221
      %v530 = vunpack.c.h.b16 %v221
      %v531 = vunpack.c.l.b16 %v222
      %v532 = vunpack.c.h.b16 %v222
      %v533 = vunpack.c.l.b16 %v223
      %v534 = vunpack.c.h.b16 %v223
      %v535 = vunpack.c.l.b16 %v224
      %v536 = vunpack.c.h.b16 %v224
      %v537 = vunpack.c.l.b16 %v225
      %v538 = vunpack.c.h.b16 %v225
      %v539 = vunpack.c.l.b16 %v226
      %v540 = vunpack.c.h.b16 %v226
      %v541 = vunpack.c.l.b16 %v227
      %v542 = vunpack.c.h.b16 %v227
      %v543 = vunpack.c.l.b16 %v228
      %v544 = vunpack.c.h.b16 %v228
      %v545 = vunpack.c.l.b16 %v229
      %v546 = vunpack.c.h.b16 %v229
      %v547 = vunpack.c.l.b16 %v230
      %v548 = vunpack.c.h.b16 %v230
      %v549 = vunpack.c.l.b16 %v231
      %v550 = vunpack.c.h.b16 %v231
      %v551 = vunpack.c.l.b16 %v232
      %v552 = vunpack.c.h.b16 %v232
      %v553 = vunpack.c.l.b16 %v233
      %v554 = vunpack.c.h.b16 %v233
      %v555 = vunpack.c.l.b16 %v234
      %v556 = vunpack.c.h.b16 %v234
      %v557 = vunpack.c.l.b16 %v235
      %v558 = vunpack.c.h.b16 %v235
      %v559 = vunpack.c.l.b16 %v236
      %v560 = vunpack.c.h.b16 %v236
      %v561 = vunpack.c.l.b16 %v237
      %v562 = vunpack.c.h.b16 %v237
      %v563 = vunpack.c.l.b16 %v238
      %v564 = vunpack.c.h.b16 %v238
      %v565 = vunpack.c.l.b16 %v239
      %v566 = vunpack.c.h.b16 %v239
      %v567 = vunpack.c.l.b16 %v240
      %v568 = vunpack.c.h.b16 %v240
      %v569 = vunpack.c.l.b16 %v241
      %v570 = vunpack.c.h.b16 %v241
      %v571 = vunpack.c.l.b16 %v242
      %v572 = vunpack.c.h.b16 %v242
      %v573 = vunpack.c.l.b16 %v243
      %v574 = vunpack.c.h.b16 %v243
      %v575 = vunpack.c.l.b16 %v244
      %v576 = vunpack.c.h.b16 %v244
      %v577 = vunpack.c.l.b16 %v245
      %v578 = vunpack.c.h.b16 %v245
      %v579 = vunpack.c.l.b16 %v246
      %v580 = vunpack.c.h.b16 %v246
      %v581 = vunpack.c.l.b16 %v247
      %v582 = vunpack.c.h.b16 %v247
      %v583 = vunpack.c.l.b16 %v248
      %v584 = vunpack.c.h.b16 %v248
      %v585 = vunpack.c.l.b16 %v249
      %v586 = vunpack.c.h.b16 %v249
      %v587 = vunpack.c.l.b16 %v250
      %v588 = vunpack.c.h.b16 %v250
      %v589 = vunpack.c.l.b16 %v251
      %v590 = vunpack.c.h.b16 %v251
      %v591 = vunpack.c.l.b16 %v252
      %v592 = vunpack.c.h.b16 %v252
      %v593 = vunpack.c.l.b16 %v253
      %v594 = vunpack.c.h.b16 %v253
      %v595 = vunpack.c.l.b16 %v254
      %v596 = vunpack.c.h.b16 %v254
      %v597 = vunpack.c.l.b16 %v255
      %v598 = vunpack.c.h.b16 %v255
      %v599 = vunpack.c.l.b16 %v256
      %v600 = vunpack.c.h.b16 %v256
      %v601 = vunpack.c.l.b16 %v257
      %v602 = vunpack.c.h.b16 %v257
      %v603 = vunpack.c.l.b16 %v258
      %v604 = vunpack.c.h.b16 %v258
      %v605 = vunpack.c.l.b16 %v259
      %v606 = vunpack.c.h.b16 %v259
      %v607 = vunpack.c.l.b16 %v260
      %v608 = vunpack.c.h.b16 %v260
      %v609 = vunpack.c.l.b16 %v261
      %v610 = vunpack.c.h.b16 %v261
      %v611 = vunpack.c.l.b16 %v262
      %v612 = vunpack.c.h.b16 %v262
      %v613 = vunpack.c.l.b16 %v263
      %v614 = vunpack.c.h.b16 %v263
      %v615 = vunpack.c.l.b16 %v264
      %v616 = vunpack.c.h.b16 %v264
      %v617 = vunpack.c.l.b16 %v265
      %v618 = vunpack.c.h.b16 %v265
      %v619 = vunpack.c.l.b16 %v266
      %v620 = vunpack.c.h.b16 %v266
      %v621 = vunpack.c.l.b16 %v267
      %v622 = vunpack.c.h.b16 %v267
      %v623 = vunpack.c.l.b16 %v268
      %v624 = vunpack.c.h.b16 %v268
      %v625 = vunpack.c.l.b16 %v269
      %v626 = vunpack.c.h.b16 %v269
      %v627 = vunpack.c.l.b16 %v270
      %v628 = vunpack.c.h.b16 %v270
      %v629 = vunpack.c.l.b16 %v271
      %v630 = vunpack.c.h.b16 %v271
      %v631 = vunpack.c.l.b16 %v272
      %v632 = vunpack.c.h.b16 %v272
      %v633 = vunpack.c.l.b16 %v273
      %v634 = vunpack.c.h.b16 %v273
      %v635 = vunpack.c.l.b16 %v274
      %v636 = vunpack.c.h.b16 %v274
      %v637 = vunpack.c.l.b16 %v275
      %v638 = vunpack.c.h.b16 %v275
      %v639 = vunpack.c.l.b16 %v276
      %v640 = vunpack.c.h.b16 %v276
      %v641 = vunpack.c.l.b16 %v277
      %v642 = vunpack.c.h.b16 %v277
      %v643 = vunpack.c.l.b16 %v278
      %v644 = vunpack.c.h.b16 %v278
      %v645 = vunpack.c.l.b16 %v279
      %v646 = vunpack.c.h.b16 %v279
      %v647 = vunpack.c.l.b16 %v280
      %v648 = vunpack.c.h.b16 %v280
      %v649 = vunpack.c.l.b16 %v281
      %v650 = vunpack.c.h.b16 %v281
      %v651 = vunpack.c.l.b16 %v282
      %v652 = vunpack.c.h.b16 %v282
      %v653 = vunpack.c.l.b16 %v283
      %v654 = vunpack.c.h.b16 %v283
      %v655 = vunpack.c.l.b16 %v284
      %v656 = vunpack.c.h.b16 %v284
      %v657 = vunpack.c.l.b16 %v285
      %v658 = vunpack.c.h.b16 %v285
      %v659 = vunpack.c.l.b16 %v286
      %v660 = vunpack.c.h.b16 %v286
      %v661 = vunpack.c.l.b16 %v287
      %v662 = vunpack.c.h.b16 %v287
      %v663 = vunpack.c.l.b16 %v288
      %v664 = vunpack.c.h.b16 %v288
      %v665 = vunpack.c.l.b16 %v289
      %v666 = vunpack.c.h.b16 %v289
      %v667 = vunpack.c.l.b16 %v290
      %v668 = vunpack.c.h.b16 %v290
      %v669 = vunpack.c.l.b16 %v291
      %v670 = vunpack.c.h.b16 %v291
      %v671 = vunpack.c.l.b16 %v292
      %v672 = vunpack.c.h.b16 %v292
      %v673 = vunpack.c.l.b16 %v293
      %v674 = vunpack.c.h.b16 %v293
      %v675 = vunpack.c.l.b16 %v294
      %v676 = vunpack.c.h.b16 %v294
      %v677 = vunpack.c.l.b16 %v295
      %v678 = vunpack.c.h.b16 %v295
      %v679 = vunpack.c.l.b16 %v296
      %v680 = vunpack.c.h.b16 %v296
      %v681 = vunpack.c.l.b16 %v297
      %v682 = vunpack.c.h.b16 %v297
      %v683 = vunpack.c.l.b16 %v298
      %v684 = vunpack.c.h.b16 %v298
      %v685 = vunpack.c.l.b16 %v299
      %v686 = vunpack.c.h.b16 %v299
      %v687 = vunpack.c.l.b16 %v300
      %v688 = vunpack.c.h.b16 %v300
      %v689 = vunpack.c.l.b16 %v301
      %v690 = vunpack.c.h.b16 %v301
      %v691 = vunpack.c.l.b16 %v302
      %v692 = vunpack.c.h.b16 %v302
      %v693 = vunpack.c.l.b16 %v303
      %v694 = vunpack.c.h.b16 %v303
      %v695 = vunpack.c.l.b16 %v304
      %v696 = vunpack.c.h.b16 %v304
      %v697 = vunpack.c.l.b16 %v305
      %v698 = vunpack.c.h.b16 %v305
      %v699 = vunpack.c.l.b16 %v306
      %v700 = vunpack.c.h.b16 %v306
      %v701 = vunpack.c.l.b16 %v307
      %v702 = vunpack.c.h.b16 %v307
      %v703 = vunpack.c.l.b16 %v308
      %v704 = vunpack.c.h.b16 %v308
      %v705 = vunpack.c.l.b16 %v309
      %v706 = vunpack.c.h.b16 %v309
      %v707 = vunpack.c.l.b16 %v310
      %v708 = vunpack.c.h.b16 %v310
      %v709 = vpack.c.b16 %v457, %v453
      %v710 = vpack.c.b16 %v458, %v454
      %v711 = vpack.c.b16 %v459, %v455
      %v712 = vpack.c.b16 %v460, %v456
      %v713 = vpack.c.b16 %v465, %v461
      %v714 = vpack.c.b16 %v466, %v462
      %v715 = vpack.c.b16 %v467, %v463
      %v716 = vpack.c.b16 %v468, %v464
      %v717 = vpack.c.b16 %v473, %v469
      %v718 = vpack.c.b16 %v474, %v470
      %v719 = vpack.c.b16 %v475, %v471
      %v720 = vpack.c.b16 %v476, %v472
      %v721 = vpack.c.b16 %v481, %v477
      %v722 = vpack.c.b16 %v482, %v478
      %v723 = vpack.c.b16 %v483, %v479
      %v724 = vpack.c.b16 %v484, %v480
      %v725 = vpack.c.b16 %v489, %v485
      %v726 = vpack.c.b16 %v490, %v486
      %v727 = vpack.c.b16 %v491, %v487
      %v728 = vpack.c.b16 %v492, %v488
      %v729 = vpack.c.b16 %v497, %v493
      %v730 = vpack.c.b16 %v498, %v494
      %v731 = vpack.c.b16 %v499, %v495
      %v732 = vpack.c.b16 %v500, %v496
      %v733 = vpack.c.b16 %v505, %v501
      %v734 = vpack.c.b16 %v506, %v502
      %v735 = vpack.c.b16 %v507, %v503
      %v736 = vpack.c.b16 %v508, %v504
      %v737 = vpack.c.b16 %v513, %v509
      %v738 = vpack.c.b16 %v514, %v510
      %v739 = vpack.c.b16 %v515, %v511
      %v740 = vpack.c.b16 %v516, %v512
      %v741 = vpack.c.b16 %v521, %v517
      %v742 = vpack.c.b16 %v522, %v518
      %v743 = vpack.c.b16 %v523, %v519
      %v744 = vpack.c.b16 %v524, %v520
      %v745 = vpack.c.b16 %v529, %v525
      %v746 = vpack.c.b16 %v530, %v526
      %v747 = vpack.c.b16 %v531, %v527
      %v748 = vpack.c.b16 %v532, %v528
      %v749 = vpack.c.b16 %v537, %v533
      %v750 = vpack.c.b16 %v538, %v534
      %v751 = vpack.c.b16 %v539, %v535
      %v752 = vpack.c.b16 %v540, %v536
      %v753 = vpack.c.b16 %v545, %v541
      %v754 = vpack.c.b16 %v546, %v542
      %v755 = vpack.c.b16 %v547, %v543
      %v756 = vpack.c.b16 %v548, %v544
      %v757 = vpack.c.b16 %v553, %v549
      %v758 = vpack.c.b16 %v554, %v550
      %v759 = vpack.c.b16 %v555, %v551
      %v760 = vpack.c.b16 %v556, %v552
      %v761 = vpack.c.b16 %v561, %v557
      %v762 = vpack.c.b16 %v562, %v558
      %v763 = vpack.c.b16 %v563, %v559
      %v764 = vpack.c.b16 %v564, %v560
      %v765 = vpack.c.b16 %v569, %v565
      %v766 = vpack.c.b16 %v570, %v566
      %v767 = vpack.c.b16 %v571, %v567
      %v768 = vpack.c.b16 %v572, %v568
      %v769 = vpack.c.b16 %v577, %v573
      %v770 = vpack.c.b16 %v578, %v574
      %v771 = vpack.c.b16 %v579, %v575
      %v772 = vpack.c.b16 %v580, %v576
      %v773 = vpack.c.b16 %v585, %v581
      %v774 = vpack.c.b16 %v586, %v582
      %v775 = vpack.c.b16 %v587, %v583
      %v776 = vpack.c.b16 %v588, %v584
      %v777 = vpack.c.b16 %v593, %v589
      %v778 = vpack.c.b16 %v594, %v590
      %v779 = vpack.c.b16 %v595, %v591
      %v780 = vpack.c.b16 %v596, %v592
      %v781 = vpack.c.b16 %v601, %v597
      %v782 = vpack.c.b16 %v602, %v598
      %v783 = vpack.c.b16 %v603, %v599
      %v784 = vpack.c.b16 %v604, %v600
      %v785 = vpack.c.b16 %v609, %v605
      %v786 = vpack.c.b16 %v610, %v606
      %v787 = vpack.c.b16 %v611, %v607
      %v788 = vpack.c.b16 %v612, %v608
      %v789 = vpack.c.b16 %v617, %v613
      %v790 = vpack.c.b16 %v618, %v614
      %v791 = vpack.c.b16 %v619, %v615
      %v792 = vpack.c.b16 %v620, %v616
      %v793 = vpack.c.b16 %v625, %v621
      %v794 = vpack.c.b16 %v626, %v622
      %v795 = vpack.c.b16 %v627, %v623
      %v796 = vpack.c.b16 %v628, %v624
      %v797 = vpack.c.b16 %v633, %v629
      %v798 = vpack.c.b16 %v634, %v630
      %v799 = vpack.c.b16 %v635, %v631
      %v800 = vpack.c.b16 %v636, %v632
      %v801 = vpack.c.b16 %v641, %v637
      %v802 = vpack.c.b16 %v642, %v638
      %v803 = vpack.c.b16 %v643, %v639
      %v804 = vpack.c.b16 %v644, %v640
      %v805 = vpack.c.b16 %v649, %v645
      %v806 = vpack.c.b16 %v650, %v646
      %v807 = vpack.c.b16 %v651, %v647
      %v808 = vpack.c.b16 %v652, %v648
      %v809 = vpack.c.b16 %v657, %v653
      %v810 = vpack.c.b16 %v658, %v654
      %v811 = vpack.c.b16 %v659, %v655
      %v812 = vpack.c.b16 %v660, %v656
      %v813 = vpack.c.b16 %v665, %v661
      %v814 = vpack.c.b16 %v666, %v662
      %v815 = vpack.c.b16 %v667, %v663
      %v816 = vpack.c.b16 %v668, %v664
      %v817 = vpack.c.b16 %v673, %v669
      %v818 = vpack.c.b16 %v674, %v670
      %v819 = vpack.c.b16 %v675, %v671
      %v820 = vpack.c.b16 %v676, %v672
      %v821 = vpack.c.b16 %v681, %v677
      %v822 = vpack.c.b16 %v682, %v678
      %v823 = vpack.c.b16 %v683, %v679
      %v824 = vpack.c.b16 %v684, %v680
      %v825 = vpack.c.b16 %v689, %v685
      %v826 = vpack.c.b16 %v690, %v686
      %v827 = vpack.c.b16 %v691, %v687
      %v828 = vpack.c.b16 %v692, %v688
      %v829 = vpack.c.b16 %v697, %v693
      %v830 = vpack.c.b16 %v698, %v694
      %v831 = vpack.c.b16 %v699, %v695
      %v832 = vpack.c.b16 %v700, %v696
      %v833 = vpack.c.b16 %v705, %v701
      %v834 = vpack.c.b16 %v706, %v702
      %v835 = vpack.c.b16 %v707, %v703
      %v836 = vpack.c.b16 %v708, %v704
      %965 = vmatprep.subr.bf16.mxu0 %v738
      %966 = vmatpush1.bf16.msra.mxu0 %v737
      %967 = vmatprep.subr.bf16.mxu0 %v734
      %968 = vmatpush1.bf16.msra.mxu0 %v733
      %969 = vmatprep.subr.bf16.mxu0 %v730
      %970 = vmatpush1.bf16.msra.mxu0 %v729
      %971 = vmatprep.subr.bf16.mxu0 %v726
      %972 = vmatpush1.bf16.msra.mxu0 %v725
      %973 = vmatprep.subr.bf16.mxu0 %v722
      %974 = vmatpush1.bf16.msra.mxu0 %v721
      %975 = vmatprep.subr.bf16.mxu0 %v718
      %976 = vmatpush1.bf16.msra.mxu0 %v717
      %977 = vmatprep.subr.bf16.mxu0 %v714
      %978 = vmatpush1.bf16.msra.mxu0 %v713
      %979 = vmatprep.subr.bf16.mxu0 %v710
      %980 = vmatpush1.bf16.msra.mxu0 %v709
      %981 = vmatprep.subr.bf16.mxu0 %v770
      %982 = vmatpush2.bf16.msra.mxu0 %v769
      %983 = vmatprep.subr.bf16.mxu0 %v766
      %984 = vmatpush2.bf16.msra.mxu0 %v765
      %985 = vmatprep.subr.bf16.mxu0 %v762
      %986 = vmatpush2.bf16.msra.mxu0 %v761
      %987 = vmatprep.subr.bf16.mxu0 %v758
      %988 = vmatpush2.bf16.msra.mxu0 %v757
      %989 = vmatprep.subr.bf16.mxu0 %v754
      %990 = vmatpush2.bf16.msra.mxu0 %v753
      %991 = vmatprep.subr.bf16.mxu0 %v750
      %992 = vmatpush2.bf16.msra.mxu0 %v749
      %993 = vmatprep.subr.bf16.mxu0 %v746
      %994 = vmatpush2.bf16.msra.mxu0 %v745
      %995 = vmatprep.subr.bf16.mxu0 %v742
      %996 = vmatpush2.bf16.msra.mxu0 %v741
      %997 = vmatprep.mubr.bf16.mxu0 %v318
      %998 = vmatmul.mubr.bf16.gmra.mxu0 %v317
      %v999 = vpop.f32.mrf.mxu0
      %v1000 = vadd.f32 0.0, %v999
      %v1001 = vpop.f32.mrf.mxu0
      %v1002 = vadd.f32 0.0, %v1001
      %v1003 = vpop.f32.mrf.mxu0
      %v1004 = vpop.f32.mrf.mxu0
      %1005 = vdwg.mxu0
      %1006 = vmatprep.subr.bf16.mxu0 %v802
      %1007 = vmatpush1.bf16.msra.mxu0 %v801
      %1008 = vmatprep.subr.bf16.mxu0 %v798
      %1009 = vmatpush1.bf16.msra.mxu0 %v797
      %1010 = vmatprep.subr.bf16.mxu0 %v794
      %1011 = vmatpush1.bf16.msra.mxu0 %v793
      %1012 = vmatprep.subr.bf16.mxu0 %v790
      %1013 = vmatpush1.bf16.msra.mxu0 %v789
      %1014 = vmatprep.subr.bf16.mxu0 %v786
      %1015 = vmatpush1.bf16.msra.mxu0 %v785
      %1016 = vmatprep.subr.bf16.mxu0 %v782
      %1017 = vmatpush1.bf16.msra.mxu0 %v781
      %1018 = vmatprep.subr.bf16.mxu0 %v778
      %1019 = vmatpush1.bf16.msra.mxu0 %v777
      %1020 = vmatprep.subr.bf16.mxu0 %v774
      %1021 = vmatpush1.bf16.msra.mxu0 %v773
      %1022 = vmatprep.subr.bf16.mxu0 %v834
      %1023 = vmatpush2.bf16.msra.mxu0 %v833
      %1024 = vmatprep.subr.bf16.mxu0 %v830
      %1025 = vmatpush2.bf16.msra.mxu0 %v829
      %1026 = vmatprep.subr.bf16.mxu0 %v826
      %1027 = vmatpush2.bf16.msra.mxu0 %v825
      %1028 = vmatprep.subr.bf16.mxu0 %v822
      %1029 = vmatpush2.bf16.msra.mxu0 %v821
      %1030 = vmatprep.subr.bf16.mxu0 %v818
      %1031 = vmatpush2.bf16.msra.mxu0 %v817
      %1032 = vmatprep.subr.bf16.mxu0 %v814
      %1033 = vmatpush2.bf16.msra.mxu0 %v813
      %1034 = vmatprep.subr.bf16.mxu0 %v810
      %1035 = vmatpush2.bf16.msra.mxu0 %v809
      %1036 = vmatprep.subr.bf16.mxu0 %v806
      %1037 = vmatpush2.bf16.msra.mxu0 %v805
      %1038 = vmatprep.mubr.bf16.mxu0 %v320
      %1039 = vmatmul.mubr.bf16.gmra.mxu0 %v319
      %v1040 = vpop.f32.mrf.mxu0
      %v1041 = vadd.f32 %v1000, %v1040
      %v1042 = vpop.f32.mrf.mxu0
      %v1043 = vadd.f32 %v1002, %v1042
      %v1044 = vpop.f32.mrf.mxu0
      %v1045 = vpop.f32.mrf.mxu0
      %1046 = vdwg.mxu0
      %1047 = vmatprep.subr.bf16.mxu0 %v740
      %1048 = vmatpush1.bf16.msra.mxu0 %v739
      %1049 = vmatprep.subr.bf16.mxu0 %v736
      %1050 = vmatpush1.bf16.msra.mxu0 %v735
      %1051 = vmatprep.subr.bf16.mxu0 %v732
      %1052 = vmatpush1.bf16.msra.mxu0 %v731
      %1053 = vmatprep.subr.bf16.mxu0 %v728
      %1054 = vmatpush1.bf16.msra.mxu0 %v727
      %1055 = vmatprep.subr.bf16.mxu0 %v724
      %1056 = vmatpush1.bf16.msra.mxu0 %v723
      %1057 = vmatprep.subr.bf16.mxu0 %v720
      %1058 = vmatpush1.bf16.msra.mxu0 %v719
      %1059 = vmatprep.subr.bf16.mxu0 %v716
      %1060 = vmatpush1.bf16.msra.mxu0 %v715
      %1061 = vmatprep.subr.bf16.mxu0 %v712
      %1062 = vmatpush1.bf16.msra.mxu0 %v711
      %1063 = vmatprep.subr.bf16.mxu0 %v772
      %1064 = vmatpush2.bf16.msra.mxu0 %v771
      %1065 = vmatprep.subr.bf16.mxu0 %v768
      %1066 = vmatpush2.bf16.msra.mxu0 %v767
      %1067 = vmatprep.subr.bf16.mxu0 %v764
      %1068 = vmatpush2.bf16.msra.mxu0 %v763
      %1069 = vmatprep.subr.bf16.mxu0 %v760
      %1070 = vmatpush2.bf16.msra.mxu0 %v759
      %1071 = vmatprep.subr.bf16.mxu0 %v756
      %1072 = vmatpush2.bf16.msra.mxu0 %v755
      %1073 = vmatprep.subr.bf16.mxu0 %v752
      %1074 = vmatpush2.bf16.msra.mxu0 %v751
      %1075 = vmatprep.subr.bf16.mxu0 %v748
      %1076 = vmatpush2.bf16.msra.mxu0 %v747
      %1077 = vmatprep.subr.bf16.mxu0 %v744
      %1078 = vmatpush2.bf16.msra.mxu0 %v743
      %1079 = vmatprep.mubr.bf16.mxu0 %v318
      %1080 = vmatmul.mubr.bf16.gmra.mxu0 %v317
      %v1081 = vpop.f32.mrf.mxu0
      %v1082 = vadd.f32 0.0, %v1081
      %v1083 = vpop.f32.mrf.mxu0
      %v1084 = vadd.f32 0.0, %v1083
      %v1085 = vpop.f32.mrf.mxu0
      %v1086 = vpop.f32.mrf.mxu0
      %1087 = vdwg.mxu0
      %1088 = vmatprep.subr.bf16.mxu0 %v804
      %1089 = vmatpush1.bf16.msra.mxu0 %v803
      %1090 = vmatprep.subr.bf16.mxu0 %v800
      %1091 = vmatpush1.bf16.msra.mxu0 %v799
      %1092 = vmatprep.subr.bf16.mxu0 %v796
      %1093 = vmatpush1.bf16.msra.mxu0 %v795
      %1094 = vmatprep.subr.bf16.mxu0 %v792
      %1095 = vmatpush1.bf16.msra.mxu0 %v791
      %1096 = vmatprep.subr.bf16.mxu0 %v788
      %1097 = vmatpush1.bf16.msra.mxu0 %v787
      %1098 = vmatprep.subr.bf16.mxu0 %v784
      %1099 = vmatpush1.bf16.msra.mxu0 %v783
      %1100 = vmatprep.subr.bf16.mxu0 %v780
      %1101 = vmatpush1.bf16.msra.mxu0 %v779
      %1102 = vmatprep.subr.bf16.mxu0 %v776
      %1103 = vmatpush1.bf16.msra.mxu0 %v775
      %1104 = vmatprep.subr.bf16.mxu0 %v836
      %1105 = vmatpush2.bf16.msra.mxu0 %v835
      %1106 = vmatprep.subr.bf16.mxu0 %v832
      %1107 = vmatpush2.bf16.msra.mxu0 %v831
      %1108 = vmatprep.subr.bf16.mxu0 %v828
      %1109 = vmatpush2.bf16.msra.mxu0 %v827
      %1110 = vmatprep.subr.bf16.mxu0 %v824
      %1111 = vmatpush2.bf16.msra.mxu0 %v823
      %1112 = vmatprep.subr.bf16.mxu0 %v820
      %1113 = vmatpush2.bf16.msra.mxu0 %v819
      %1114 = vmatprep.subr.bf16.mxu0 %v816
      %1115 = vmatpush2.bf16.msra.mxu0 %v815
      %1116 = vmatprep.subr.bf16.mxu0 %v812
      %1117 = vmatpush2.bf16.msra.mxu0 %v811
      %1118 = vmatprep.subr.bf16.mxu0 %v808
      %1119 = vmatpush2.bf16.msra.mxu0 %v807
      %1120 = vmatprep.mubr.bf16.mxu0 %v320
      %1121 = vmatmul.mubr.bf16.gmra.mxu0 %v319
      %v1122 = vpop.f32.mrf.mxu0
      %v1123 = vadd.f32 %v1082, %v1122
      %v1124 = vpop.f32.mrf.mxu0
      %v1125 = vadd.f32 %v1084, %v1124
      %v1126 = vpop.f32.mrf.mxu0
      %v1127 = vpop.f32.mrf.mxu0
      %1128 = vdwg.mxu0
      %v1129 = vadd.f32 %v174, %v1041
      %v1130 = vadd.f32 %v175, %v1043
      %v1131 = vadd.f32 %v176, %v1123
      %v1132 = vadd.f32 %v177, %v1125
      %1133 = vst [vmem:[#allocation2] sm:$0xff] %v1129
      %1134 = vst [vmem:[#allocation2 + $0x8] sm:$0xff] %v1130
      %1135 = vst [vmem:[#allocation2 + $0x10] sm:$0xff] %v1131
      %1136 = vst [vmem:[#allocation2 + $0x18] sm:$0xff] %v1132
      %p1137 = scmp.eq.s32.totalorder %s18, 2
      // Predicated region
      $region33: #{wiener_hammerstein_forward.3} parent=27 // pred_check
        %p1138 = pneg %p1137
      $region34: #{wiener_hammerstein_forward.3} parent=27 // pred_check_branch
        %1140 = sbr.rel (%p1138) target = $region36
      $region35: #{wiener_hammerstein_forward.3} parent=27 // pred_region
        %v1141 = vld [vmem:[#allocation2] sm:$0xff]
        %v1142 = vld [vmem:[#allocation2 + $0x8] sm:$0xff]
        %v1143 = vld [vmem:[#allocation2 + $0x10] sm:$0xff]
        %v1144 = vld [vmem:[#allocation2 + $0x18] sm:$0xff]
        %1145 = vst [vmem:[%s164] sm:$0xff] %v1141
        %1146 = vst [vmem:[%s164 + $0x8] sm:$0xff] %v1142
        %1147 = vst [vmem:[%s164 + $0x10] sm:$0xff] %v1143
        %1148 = vst [vmem:[%s164 + $0x18] sm:$0xff] %v1144
      $region36: #{wiener_hammerstein_forward.3} parent=27 // pred_fallthru
        _
      %s1149 = smul.u32 4, %s17
      %p1150 = scmp.lt.s32.totalorder %s1149, 7
      %s1151 = scalar_select %p1150, %s1149, 7
      %s1152 = smul.addr %s1151, 8
      %s1153 = scalar_lea.vmem %s2, %s1152
      // Predicated region
      $region37: #{wiener_hammerstein_forward.3} parent=27 // pred_check
        %p1154 = pneg %p92
      $region38: #{wiener_hammerstein_forward.3} parent=27 // pred_check_branch
        %1156 = sbr.rel (%p1154) target = $region40
      $region39: #{wiener_hammerstein_forward.3} parent=27 // pred_region
        %s1157 = smul.u32 4, %s17
      $region40: #{wiener_hammerstein_forward.3} parent=27 // pred_fallthru
        _
    $region28: #{wiener_hammerstein_forward.3} parent=5 // pred_fallthru
      _
    %p1158 = scmp.le.s32.totalorder 2, %s8
    // Predicated region
    $region41: #{wiener_hammerstein_forward.3} parent=5 // pred_check
      %p1159 = pneg %p1158
    $region42: #{wiener_hammerstein_forward.3} parent=5 // pred_check_branch
      %1161 = sbr.rel (%p1159) target = $region44
    $region43: #{wiener_hammerstein_forward.3} parent=5 // pred_region
      %s1162 = ssub.s32 %s8, 2
      // Predicated region
      $region45: #{wiener_hammerstein_forward.3} parent=43 // pred_check
        %p1163 = pneg %p98
      $region46: #{wiener_hammerstein_forward.3} parent=43 // pred_check_branch
        %1165 = sbr.rel (%p1163) target = $region48
      $region47: #{wiener_hammerstein_forward.3} parent=43 // pred_region
        %s1166 = smul.u32 4, %s19
        %p1167 = scmp.lt.s32.totalorder %s1166, 7
        %s1168 = scalar_select %p1167, %s1166, 7
        %s1169 = smul.addr %s1168, 8
        %s1170 = scalar_lea.vmem %s2, %s1169
      $region48: #{wiener_hammerstein_forward.3} parent=43 // pred_fallthru
        _
    $region44: #{wiener_hammerstein_forward.3} parent=5 // pred_fallthru
      _
  $region6: #{wiener_hammerstein_forward.3} parent=0 // loop_footer
    %s12 = sadd.s32 1, %s8
  $region7: #{wiener_hammerstein_forward.3} parent=0 // loop_footer_branch
    %7 = sbr.rel target = $region3
  $region8: #{wiener_hammerstein_forward.3} parent=0 // loop_exit
    _

// kernel: wiener_hammerstein_forward.2
$region0: #{wiener_hammerstein_forward.2}
  #allocation0 [shape = 'u32[]', space=smem, size = 0x4, offset = 0x4, fixed_abs, tag = 'smem constant byte address 0x4 - core index']
  #allocation1 [shape = 'u32[144,128]{1,0:T(1,128)}', space=vmem, size = 0x12000, scoped, tag = 'internal scratch']
  #allocation2 [shape = 'f32[8,512]{1,0:T(8,128)}', space=vmem, size = 0x4000, scoped, tag = 'scratch operand']
  %s0 = inlined_call_operand.vmem [shape: bf16[8,3072], index: 0, kind: input, shape index: {}]
  %s1 = inlined_call_operand.vmem [shape: bf16[3,512,512], index: 1, kind: input, shape index: {}]
  %s2 = inlined_call_operand.vmem [shape: f32[8,1], index: 2, kind: input, shape index: {}]
  %s3 = inlined_call_operand.vmem [shape: f32[8,1], index: 3, kind: input, shape index: {}]
  %s4 = inlined_call_operand.vmem [shape: bf16[8,2048], index: 4, kind: output, shape index: {}]
  %s5 = sld [smem:[#allocation0]]
  $region57: #{wiener_hammerstein_forward.2} parent=0
    _
  %s7 = ssub.s32 1, %s5
  %s8 = scalar_select 0, %s7, %s5
  loop: start=0, step=1, limit=14
  $region2: #{wiener_hammerstein_forward.2} parent=0 // loop_pre_header
    _
  $region3: #{wiener_hammerstein_forward.2} parent=0 // loop_header
    %s10 = sphi 0, %s14
    %p11 = scmp.ge.s32.totalorder %s10, 14
    %s17 = sphi 0, %s29
    %s18 = sphi 0, %s25
    %s19 = sphi 0, %s17
    %s20 = sphi 0, %s18
    %s21 = sphi 0, %s19
    %s22 = sphi 0, %s20
    %s34 = sphi 0, %s36
    %s37 = sphi 0, %s34
    %s38 = sphi 0, %s37
    %s54 = sphi 0, %s38
    %s58 = sphi 0, %s58
    %s60 = sphi 0, %s58
    %s61 = sphi 0, %s60
    %s75 = sphi 0, %s61
    %s79 = sphi 0, %s79
    %s81 = sphi 0, %s79
    %s82 = sphi 0, %s81
    %s96 = sphi 0, %s82
    %s100 = sphi 0, %s100
    %s102 = sphi 0, %s100
    %s103 = sphi 0, %s102
    %s117 = sphi 0, %s103
    %s123 = sphi 0, %s125
    %s126 = sphi 0, %s123
    %s127 = sphi 0, %s126
    %s143 = sphi 0, %s127
  $region4: #{wiener_hammerstein_forward.2} parent=0 // loop_header_branch
    %13 = sbr.rel (%p11) target = $region8
  $region5: #{wiener_hammerstein_forward.2} parent=0 // loop_body
    %s15 = ssub.s32 %s10, 1
    %s16 = ssub.s32 %s10, 2
    %s23 = sadd.s32 1, %s18
    %p24 = scmp.ge.s32.totalorder %s23, 3
    %s25 = scalar_select %p24, 0, %s23
    %s26 = sadd.s32 1, %s17
    %s27 = scalar_select %p24, %s26, %s17
    %p28 = scmp.ge.s32.totalorder %s27, 4
    %s29 = scalar_select %p28, 0, %s27
    %s30 = sadd.s32 %s17, %s18
    %s31 = sadd.s32 %s29, %s25
    %s32 = ssub.s32 %s30, %s31
    %p33 = scmp.eq.s32.totalorder %s32, 0
    %s35 = sadd.s32 %s34, 1
    %s36 = scalar_select %p33, %s34, %s35
    %p39 = pneg %p33
    %p40 = scmp.eq.s32.totalorder %s10, 11
    %p41 = por %p39, %p40
    %p42 = scmp.ne.s32.totalorder %s34, %s37
    %p43 = scmp.eq.s32.totalorder %s10, 0
    %p44 = por %p42, %p43
    %p45 = scmp.ne.s32.totalorder %s34, %s37
    %p46 = scmp.eq.s32.totalorder %s15, 11
    %p47 = por %p45, %p46
    %p48 = scmp.ne.s32.totalorder %s37, %s38
    %p49 = scmp.eq.s32.totalorder %s15, 0
    %p50 = por %p48, %p49
    %p51 = scmp.ne.s32.totalorder %s37, %s38
    %p52 = scmp.eq.s32.totalorder %s16, 11
    %p53 = por %p51, %p52
    %p55 = scmp.ne.s32.totalorder %s38, %s54
    %p56 = scmp.eq.s32.totalorder %s16, 0
    %p57 = por %p55, %p56
    %s59 = sadd.s32 %s58, 1
    %p62 = scmp.eq.s32.totalorder %s10, 11
    %p63 = scmp.ne.s32.totalorder %s58, %s60
    %p64 = scmp.eq.s32.totalorder %s10, 0
    %p65 = por %p63, %p64
    %p66 = scmp.ne.s32.totalorder %s58, %s60
    %p67 = scmp.eq.s32.totalorder %s15, 11
    %p68 = por %p66, %p67
    %p69 = scmp.ne.s32.totalorder %s60, %s61
    %p70 = scmp.eq.s32.totalorder %s15, 0
    %p71 = por %p69, %p70
    %p72 = scmp.ne.s32.totalorder %s60, %s61
    %p73 = scmp.eq.s32.totalorder %s16, 11
    %p74 = por %p72, %p73
    %p76 = scmp.ne.s32.totalorder %s61, %s75
    %p77 = scmp.eq.s32.totalorder %s16, 0
    %p78 = por %p76, %p77
    %s80 = sadd.s32 %s79, 1
    %p83 = scmp.eq.s32.totalorder %s10, 11
    %p84 = scmp.ne.s32.totalorder %s79, %s81
    %p85 = scmp.eq.s32.totalorder %s10, 0
    %p86 = por %p84, %p85
    %p87 = scmp.ne.s32.totalorder %s79, %s81
    %p88 = scmp.eq.s32.totalorder %s15, 11
    %p89 = por %p87, %p88
    %p90 = scmp.ne.s32.totalorder %s81, %s82
    %p91 = scmp.eq.s32.totalorder %s15, 0
    %p92 = por %p90, %p91
    %p93 = scmp.ne.s32.totalorder %s81, %s82
    %p94 = scmp.eq.s32.totalorder %s16, 11
    %p95 = por %p93, %p94
    %p97 = scmp.ne.s32.totalorder %s82, %s96
    %p98 = scmp.eq.s32.totalorder %s16, 0
    %p99 = por %p97, %p98
    %s101 = sadd.s32 %s100, 1
    %p104 = scmp.eq.s32.totalorder %s10, 11
    %p105 = scmp.ne.s32.totalorder %s100, %s102
    %p106 = scmp.eq.s32.totalorder %s10, 0
    %p107 = por %p105, %p106
    %p108 = scmp.ne.s32.totalorder %s100, %s102
    %p109 = scmp.eq.s32.totalorder %s15, 11
    %p110 = por %p108, %p109
    %p111 = scmp.ne.s32.totalorder %s102, %s103
    %p112 = scmp.eq.s32.totalorder %s15, 0
    %p113 = por %p111, %p112
    %p114 = scmp.ne.s32.totalorder %s102, %s103
    %p115 = scmp.eq.s32.totalorder %s16, 11
    %p116 = por %p114, %p115
    %p118 = scmp.ne.s32.totalorder %s103, %s117
    %p119 = scmp.eq.s32.totalorder %s16, 0
    %p120 = por %p118, %p119
    %s121 = ssub.s32 %s17, %s29
    %p122 = scmp.eq.s32.totalorder %s121, 0
    %s124 = sadd.s32 %s123, 1
    %s125 = scalar_select %p122, %s123, %s124
    %p128 = pneg %p122
    %p129 = scmp.eq.s32.totalorder %s10, 11
    %p130 = por %p128, %p129
    %p131 = scmp.ne.s32.totalorder %s123, %s126
    %p132 = scmp.eq.s32.totalorder %s10, 0
    %p133 = por %p131, %p132
    %p134 = scmp.ne.s32.totalorder %s123, %s126
    %p135 = scmp.eq.s32.totalorder %s15, 11
    %p136 = por %p134, %p135
    %p137 = scmp.ne.s32.totalorder %s126, %s127
    %p138 = scmp.eq.s32.totalorder %s15, 0
    %p139 = por %p137, %p138
    %p140 = scmp.ne.s32.totalorder %s126, %s127
    %p141 = scmp.eq.s32.totalorder %s16, 11
    %p142 = por %p140, %p141
    %p144 = scmp.ne.s32.totalorder %s127, %s143
    %p145 = scmp.eq.s32.totalorder %s16, 0
    %p146 = por %p144, %p145
    %p147 = scmp.le.s32.totalorder 1, %s10
    %p148 = scmp.lt.s32.totalorder %s10, 13
    %p149 = pnand %p147, %p148
    %p150 = pneg %p149
    // Predicated region
    $region9: #{wiener_hammerstein_forward.2} parent=5 // pred_check
      _
    $region10: #{wiener_hammerstein_forward.2} parent=5 // pred_check_branch
      %152 = sbr.rel (%p149) target = $region12
    $region11: #{wiener_hammerstein_forward.2} parent=5 // pred_region
      %s153 = ssub.s32 %s10, 1
      // Predicated region
      $region13: #{wiener_hammerstein_forward.2} parent=11 // pred_check
        %p154 = pneg %p71
      $region14: #{wiener_hammerstein_forward.2} parent=11 // pred_check_branch
        %156 = sbr.rel (%p154) target = $region16
      $region15: #{wiener_hammerstein_forward.2} parent=11 // pred_region
        _
      $region16: #{wiener_hammerstein_forward.2} parent=11 // pred_fallthru
        _
      // Predicated region
      $region17: #{wiener_hammerstein_forward.2} parent=11 // pred_check
        %p157 = pneg %p92
      $region18: #{wiener_hammerstein_forward.2} parent=11 // pred_check_branch
        %159 = sbr.rel (%p157) target = $region20
      $region19: #{wiener_hammerstein_forward.2} parent=11 // pred_region
        _
      $region20: #{wiener_hammerstein_forward.2} parent=11 // pred_fallthru
        _
      // Predicated region
      $region21: #{wiener_hammerstein_forward.2} parent=11 // pred_check
        %p160 = pneg %p113
      $region22: #{wiener_hammerstein_forward.2} parent=11 // pred_check_branch
        %162 = sbr.rel (%p160) target = $region24
      $region23: #{wiener_hammerstein_forward.2} parent=11 // pred_region
        _
      $region24: #{wiener_hammerstein_forward.2} parent=11 // pred_fallthru
        _
    $region12: #{wiener_hammerstein_forward.2} parent=5 // pred_fallthru
      _
    %p163 = scmp.lt.s32.totalorder %s10, 12
    // Predicated region
    $region25: #{wiener_hammerstein_forward.2} parent=5 // pred_check
      %p164 = pneg %p163
    $region26: #{wiener_hammerstein_forward.2} parent=5 // pred_check_branch
      %166 = sbr.rel (%p164) target = $region28
    $region27: #{wiener_hammerstein_forward.2} parent=5 // pred_region
      // Predicated region
      $region29: #{wiener_hammerstein_forward.2} parent=27 // pred_check
        %p167 = pneg %p44
      $region30: #{wiener_hammerstein_forward.2} parent=27 // pred_check_branch
        %169 = sbr.rel (%p167) target = $region32
      $region31: #{wiener_hammerstein_forward.2} parent=27 // pred_region
        %s170 = sadd.s32 %s17, %s18
        %s171 = smul.u32 4, %s170
        %p172 = scmp.lt.s32.totalorder %s171, 23
        %s173 = scalar_select %p172, %s171, 23
        %s174 = smul.addr %s173, 4
        %s175 = scalar_lea.vmem %s0, %s174
        %s176 = sadd.s32 %s17, %s18
        %s177 = smul.u32 4, %s176
      $region32: #{wiener_hammerstein_forward.2} parent=27 // pred_fallthru
        _
    $region28: #{wiener_hammerstein_forward.2} parent=5 // pred_fallthru
      _
    %p178 = scmp.le.s32.totalorder 1, %s10
    %p179 = scmp.lt.s32.totalorder %s10, 13
    %p180 = pnand %p178, %p179
    %p181 = pneg %p180
    // Predicated region
    $region33: #{wiener_hammerstein_forward.2} parent=5 // pred_check
      _
    $region34: #{wiener_hammerstein_forward.2} parent=5 // pred_check_branch
      %183 = sbr.rel (%p180) target = $region36
    $region35: #{wiener_hammerstein_forward.2} parent=5 // pred_region
      %s184 = ssub.s32 %s10, 1
      %s185 = sadd.s32 %s19, %s20
      %s186 = smul.u32 4, %s185
      %p187 = scmp.lt.s32.totalorder %s186, 23
      %s188 = scalar_select %p187, %s186, 23
      %s189 = smul.addr %s188, 4
      %s190 = scalar_lea.vmem %s0, %s189
      %p191 = pneg %p50
      %p192 = pneg %p47
      %p193 = pneg %p71
      %p194 = pneg %p68
      %p195 = pneg %p92
      %p196 = pneg %p89
      %p197 = pneg %p113
      %p198 = pneg %p110
      %p199 = pneg %p139
      %p200 = pneg %p136
      %s201 = smul.u32 4, %s19
      %p202 = scmp.lt.s32.totalorder %s201, 15
      %s203 = scalar_select %p202, %s201, 15
      %s204 = smul.addr %s203, 4
      %s205 = scalar_lea.vmem %s4, %s204
      %s206 = sadd.s32 %s19, %s20
      %s207 = smul.u32 4, %s206
      %p208 = scmp.lt.s32.totalorder %s207, 23
      %s209 = scalar_select %p208, %s207, 23
      %s210 = smul.addr %s209, 4
      %s211 = scalar_lea.vmem %s0, %s210
      %s212 = sadd.s32 %s19, %s20
      %s213 = smul.u32 4, %s212
      %s214 = smul.u32 4, %s19
      %p215 = scmp.lt.s32.totalorder %s214, 15
      %s216 = scalar_select %p215, %s214, 15
      %s217 = smul.addr %s216, 4
      %s218 = scalar_lea.vmem %s4, %s217
      %s219 = smul.u32 4, %s19
      %p220 = scmp.eq.s32.totalorder %s20, 0
      // Predicated region
      $region37: #{wiener_hammerstein_forward.2} parent=35 // pred_check
        %p221 = pneg %p220
      $region38: #{wiener_hammerstein_forward.2} parent=35 // pred_check_branch
        %223 = sbr.rel (%p221) target = $region40
      $region39: #{wiener_hammerstein_forward.2} parent=35 // pred_region
        %224 = vst [vmem:[#allocation2] sm:$0xff] 0.0
        %225 = vst [vmem:[#allocation2 + $0x8] sm:$0xff] 0.0
        %226 = vst [vmem:[#allocation2 + $0x10] sm:$0xff] 0.0
        %227 = vst [vmem:[#allocation2 + $0x18] sm:$0xff] 0.0
      $region40: #{wiener_hammerstein_forward.2} parent=35 // pred_fallthru
        _
      %v228 = vld [vmem:[#allocation2] sm:$0xff]
      %v229 = vld [vmem:[#allocation2 + $0x8] sm:$0xff]
      %v230 = vld [vmem:[#allocation2 + $0x10] sm:$0xff]
      %v231 = vld [vmem:[#allocation2 + $0x18] sm:$0xff]
      %v232 = vld [vmem:[%s211] sm:$0xff]
      %v233 = vld [vmem:[%s211 + $0x8] sm:$0xff]
      %s234 = smul.u32 %s20, 256
      %s235 = smul.addr %s234, 4
      %s236 = scalar_lea.vmem %s1, %s235
      %v237 = vld [vmem:[%s236] sm:$0xff]
      %v238 = vld [vmem:[%s236 + $0x8] sm:$0xff]
      %v239 = vld [vmem:[%s236 + $0x10] sm:$0xff]
      %v240 = vld [vmem:[%s236 + $0x18] sm:$0xff]
      %v241 = vld [vmem:[%s236 + $0x20] sm:$0xff]
      %v242 = vld [vmem:[%s236 + $0x28] sm:$0xff]
      %v243 = vld [vmem:[%s236 + $0x30] sm:$0xff]
      %v244 = vld [vmem:[%s236 + $0x38] sm:$0xff]
      %v245 = vld [vmem:[%s236 + $0x40] sm:$0xff]
      %v246 = vld [vmem:[%s236 + $0x48] sm:$0xff]
      %v247 = vld [vmem:[%s236 + $0x50] sm:$0xff]
      %v248 = vld [vmem:[%s236 + $0x58] sm:$0xff]
      %v249 = vld [vmem:[%s236 + $0x60] sm:$0xff]
      %v250 = vld [vmem:[%s236 + $0x68] sm:$0xff]
      %v251 = vld [vmem:[%s236 + $0x70] sm:$0xff]
      %v252 = vld [vmem:[%s236 + $0x78] sm:$0xff]
      %v253 = vld [vmem:[%s236 + $0x80] sm:$0xff]
      %v254 = vld [vmem:[%s236 + $0x88] sm:$0xff]
      %v255 = vld [vmem:[%s236 + $0x90] sm:$0xff]
      %v256 = vld [vmem:[%s236 + $0x98] sm:$0xff]
      %v257 = vld [vmem:[%s236 + $0xa0] sm:$0xff]
      %v258 = vld [vmem:[%s236 + $0xa8] sm:$0xff]
      %v259 = vld [vmem:[%s236 + $0xb0] sm:$0xff]
      %v260 = vld [vmem:[%s236 + $0xb8] sm:$0xff]
      %v261 = vld [vmem:[%s236 + $0xc0] sm:$0xff]
      %v262 = vld [vmem:[%s236 + $0xc8] sm:$0xff]
      %v263 = vld [vmem:[%s236 + $0xd0] sm:$0xff]
      %v264 = vld [vmem:[%s236 + $0xd8] sm:$0xff]
      %v265 = vld [vmem:[%s236 + $0xe0] sm:$0xff]
      %v266 = vld [vmem:[%s236 + $0xe8] sm:$0xff]
      %v267 = vld [vmem:[%s236 + $0xf0] sm:$0xff]
      %v268 = vld [vmem:[%s236 + $0xf8] sm:$0xff]
      %v269 = vld [vmem:[%s236 + $0x100] sm:$0xff]
      %v270 = vld [vmem:[%s236 + $0x108] sm:$0xff]
      %v271 = vld [vmem:[%s236 + $0x110] sm:$0xff]
      %v272 = vld [vmem:[%s236 + $0x118] sm:$0xff]
      %v273 = vld [vmem:[%s236 + $0x120] sm:$0xff]
      %v274 = vld [vmem:[%s236 + $0x128] sm:$0xff]
      %v275 = vld [vmem:[%s236 + $0x130] sm:$0xff]
      %v276 = vld [vmem:[%s236 + $0x138] sm:$0xff]
      %v277 = vld [vmem:[%s236 + $0x140] sm:$0xff]
      %v278 = vld [vmem:[%s236 + $0x148] sm:$0xff]
      %v279 = vld [vmem:[%s236 + $0x150] sm:$0xff]
      %v280 = vld [vmem:[%s236 + $0x158] sm:$0xff]
      %v281 = vld [vmem:[%s236 + $0x160] sm:$0xff]
      %v282 = vld [vmem:[%s236 + $0x168] sm:$0xff]
      %v283 = vld [vmem:[%s236 + $0x170] sm:$0xff]
      %v284 = vld [vmem:[%s236 + $0x178] sm:$0xff]
      %v285 = vld [vmem:[%s236 + $0x180] sm:$0xff]
      %v286 = vld [vmem:[%s236 + $0x188] sm:$0xff]
      %v287 = vld [vmem:[%s236 + $0x190] sm:$0xff]
      %v288 = vld [vmem:[%s236 + $0x198] sm:$0xff]
      %v289 = vld [vmem:[%s236 + $0x1a0] sm:$0xff]
      %v290 = vld [vmem:[%s236 + $0x1a8] sm:$0xff]
      %v291 = vld [vmem:[%s236 + $0x1b0] sm:$0xff]
      %v292 = vld [vmem:[%s236 + $0x1b8] sm:$0xff]
      %v293 = vld [vmem:[%s236 + $0x1c0] sm:$0xff]
      %v294 = vld [vmem:[%s236 + $0x1c8] sm:$0xff]
      %v295 = vld [vmem:[%s236 + $0x1d0] sm:$0xff]
      %v296 = vld [vmem:[%s236 + $0x1d8] sm:$0xff]
      %v297 = vld [vmem:[%s236 + $0x1e0] sm:$0xff]
      %v298 = vld [vmem:[%s236 + $0x1e8] sm:$0xff]
      %v299 = vld [vmem:[%s236 + $0x1f0] sm:$0xff]
      %v300 = vld [vmem:[%s236 + $0x1f8] sm:$0xff]
      %v301 = vld [vmem:[%s236 + $0x200] sm:$0xff]
      %v302 = vld [vmem:[%s236 + $0x208] sm:$0xff]
      %v303 = vld [vmem:[%s236 + $0x210] sm:$0xff]
      %v304 = vld [vmem:[%s236 + $0x218] sm:$0xff]
      %v305 = vld [vmem:[%s236 + $0x220] sm:$0xff]
      %v306 = vld [vmem:[%s236 + $0x228] sm:$0xff]
      %v307 = vld [vmem:[%s236 + $0x230] sm:$0xff]
      %v308 = vld [vmem:[%s236 + $0x238] sm:$0xff]
      %v309 = vld [vmem:[%s236 + $0x240] sm:$0xff]
      %v310 = vld [vmem:[%s236 + $0x248] sm:$0xff]
      %v311 = vld [vmem:[%s236 + $0x250] sm:$0xff]
      %v312 = vld [vmem:[%s236 + $0x258] sm:$0xff]
      %v313 = vld [vmem:[%s236 + $0x260] sm:$0xff]
      %v314 = vld [vmem:[%s236 + $0x268] sm:$0xff]
      %v315 = vld [vmem:[%s236 + $0x270] sm:$0xff]
      %v316 = vld [vmem:[%s236 + $0x278] sm:$0xff]
      %v317 = vld [vmem:[%s236 + $0x280] sm:$0xff]
      %v318 = vld [vmem:[%s236 + $0x288] sm:$0xff]
      %v319 = vld [vmem:[%s236 + $0x290] sm:$0xff]
      %v320 = vld [vmem:[%s236 + $0x298] sm:$0xff]
      %v321 = vld [vmem:[%s236 + $0x2a0] sm:$0xff]
      %v322 = vld [vmem:[%s236 + $0x2a8] sm:$0xff]
      %v323 = vld [vmem:[%s236 + $0x2b0] sm:$0xff]
      %v324 = vld [vmem:[%s236 + $0x2b8] sm:$0xff]
      %v325 = vld [vmem:[%s236 + $0x2c0] sm:$0xff]
      %v326 = vld [vmem:[%s236 + $0x2c8] sm:$0xff]
      %v327 = vld [vmem:[%s236 + $0x2d0] sm:$0xff]
      %v328 = vld [vmem:[%s236 + $0x2d8] sm:$0xff]
      %v329 = vld [vmem:[%s236 + $0x2e0] sm:$0xff]
      %v330 = vld [vmem:[%s236 + $0x2e8] sm:$0xff]
      %v331 = vld [vmem:[%s236 + $0x2f0] sm:$0xff]
      %v332 = vld [vmem:[%s236 + $0x2f8] sm:$0xff]
      %v333 = vld [vmem:[%s236 + $0x300] sm:$0xff]
      %v334 = vld [vmem:[%s236 + $0x308] sm:$0xff]
      %v335 = vld [vmem:[%s236 + $0x310] sm:$0xff]
      %v336 = vld [vmem:[%s236 + $0x318] sm:$0xff]
      %v337 = vld [vmem:[%s236 + $0x320] sm:$0xff]
      %v338 = vld [vmem:[%s236 + $0x328] sm:$0xff]
      %v339 = vld [vmem:[%s236 + $0x330] sm:$0xff]
      %v340 = vld [vmem:[%s236 + $0x338] sm:$0xff]
      %v341 = vld [vmem:[%s236 + $0x340] sm:$0xff]
      %v342 = vld [vmem:[%s236 + $0x348] sm:$0xff]
      %v343 = vld [vmem:[%s236 + $0x350] sm:$0xff]
      %v344 = vld [vmem:[%s236 + $0x358] sm:$0xff]
      %v345 = vld [vmem:[%s236 + $0x360] sm:$0xff]
      %v346 = vld [vmem:[%s236 + $0x368] sm:$0xff]
      %v347 = vld [vmem:[%s236 + $0x370] sm:$0xff]
      %v348 = vld [vmem:[%s236 + $0x378] sm:$0xff]
      %v349 = vld [vmem:[%s236 + $0x380] sm:$0xff]
      %v350 = vld [vmem:[%s236 + $0x388] sm:$0xff]
      %v351 = vld [vmem:[%s236 + $0x390] sm:$0xff]
      %v352 = vld [vmem:[%s236 + $0x398] sm:$0xff]
      %v353 = vld [vmem:[%s236 + $0x3a0] sm:$0xff]
      %v354 = vld [vmem:[%s236 + $0x3a8] sm:$0xff]
      %v355 = vld [vmem:[%s236 + $0x3b0] sm:$0xff]
      %v356 = vld [vmem:[%s236 + $0x3b8] sm:$0xff]
      %v357 = vld [vmem:[%s236 + $0x3c0] sm:$0xff]
      %v358 = vld [vmem:[%s236 + $0x3c8] sm:$0xff]
      %v359 = vld [vmem:[%s236 + $0x3d0] sm:$0xff]
      %v360 = vld [vmem:[%s236 + $0x3d8] sm:$0xff]
      %v361 = vld [vmem:[%s236 + $0x3e0] sm:$0xff]
      %v362 = vld [vmem:[%s236 + $0x3e8] sm:$0xff]
      %v363 = vld [vmem:[%s236 + $0x3f0] sm:$0xff]
      %v364 = vld [vmem:[%s236 + $0x3f8] sm:$0xff]
      %v367 = vunpack.c.l.b16 %v232
      %v368 = vunpack.c.h.b16 %v232
      %v369 = vunpack.c.l.b16 %v233
      %v370 = vunpack.c.h.b16 %v233
      %v371 = vpack.c.b16 %v367, %v367
      %v372 = vpack.c.b16 %v368, %v368
      %v373 = vpack.c.b16 %v369, %v369
      %v374 = vpack.c.b16 %v370, %v370
      %v507 = vunpack.c.l.b16 %v237
      %v508 = vunpack.c.h.b16 %v237
      %v509 = vunpack.c.l.b16 %v238
      %v510 = vunpack.c.h.b16 %v238
      %v511 = vunpack.c.l.b16 %v239
      %v512 = vunpack.c.h.b16 %v239
      %v513 = vunpack.c.l.b16 %v240
      %v514 = vunpack.c.h.b16 %v240
      %v515 = vunpack.c.l.b16 %v241
      %v516 = vunpack.c.h.b16 %v241
      %v517 = vunpack.c.l.b16 %v242
      %v518 = vunpack.c.h.b16 %v242
      %v519 = vunpack.c.l.b16 %v243
      %v520 = vunpack.c.h.b16 %v243
      %v521 = vunpack.c.l.b16 %v244
      %v522 = vunpack.c.h.b16 %v244
      %v523 = vunpack.c.l.b16 %v245
      %v524 = vunpack.c.h.b16 %v245
      %v525 = vunpack.c.l.b16 %v246
      %v526 = vunpack.c.h.b16 %v246
      %v527 = vunpack.c.l.b16 %v247
      %v528 = vunpack.c.h.b16 %v247
      %v529 = vunpack.c.l.b16 %v248
      %v530 = vunpack.c.h.b16 %v248
      %v531 = vunpack.c.l.b16 %v249
      %v532 = vunpack.c.h.b16 %v249
      %v533 = vunpack.c.l.b16 %v250
      %v534 = vunpack.c.h.b16 %v250
      %v535 = vunpack.c.l.b16 %v251
      %v536 = vunpack.c.h.b16 %v251
      %v537 = vunpack.c.l.b16 %v252
      %v538 = vunpack.c.h.b16 %v252
      %v539 = vunpack.c.l.b16 %v253
      %v540 = vunpack.c.h.b16 %v253
      %v541 = vunpack.c.l.b16 %v254
      %v542 = vunpack.c.h.b16 %v254
      %v543 = vunpack.c.l.b16 %v255
      %v544 = vunpack.c.h.b16 %v255
      %v545 = vunpack.c.l.b16 %v256
      %v546 = vunpack.c.h.b16 %v256
      %v547 = vunpack.c.l.b16 %v257
      %v548 = vunpack.c.h.b16 %v257
      %v549 = vunpack.c.l.b16 %v258
      %v550 = vunpack.c.h.b16 %v258
      %v551 = vunpack.c.l.b16 %v259
      %v552 = vunpack.c.h.b16 %v259
      %v553 = vunpack.c.l.b16 %v260
      %v554 = vunpack.c.h.b16 %v260
      %v555 = vunpack.c.l.b16 %v261
      %v556 = vunpack.c.h.b16 %v261
      %v557 = vunpack.c.l.b16 %v262
      %v558 = vunpack.c.h.b16 %v262
      %v559 = vunpack.c.l.b16 %v263
      %v560 = vunpack.c.h.b16 %v263
      %v561 = vunpack.c.l.b16 %v264
      %v562 = vunpack.c.h.b16 %v264
      %v563 = vunpack.c.l.b16 %v265
      %v564 = vunpack.c.h.b16 %v265
      %v565 = vunpack.c.l.b16 %v266
      %v566 = vunpack.c.h.b16 %v266
      %v567 = vunpack.c.l.b16 %v267
      %v568 = vunpack.c.h.b16 %v267
      %v569 = vunpack.c.l.b16 %v268
      %v570 = vunpack.c.h.b16 %v268
      %v571 = vunpack.c.l.b16 %v269
      %v572 = vunpack.c.h.b16 %v269
      %v573 = vunpack.c.l.b16 %v270
      %v574 = vunpack.c.h.b16 %v270
      %v575 = vunpack.c.l.b16 %v271
      %v576 = vunpack.c.h.b16 %v271
      %v577 = vunpack.c.l.b16 %v272
      %v578 = vunpack.c.h.b16 %v272
      %v579 = vunpack.c.l.b16 %v273
      %v580 = vunpack.c.h.b16 %v273
      %v581 = vunpack.c.l.b16 %v274
      %v582 = vunpack.c.h.b16 %v274
      %v583 = vunpack.c.l.b16 %v275
      %v584 = vunpack.c.h.b16 %v275
      %v585 = vunpack.c.l.b16 %v276
      %v586 = vunpack.c.h.b16 %v276
      %v587 = vunpack.c.l.b16 %v277
      %v588 = vunpack.c.h.b16 %v277
      %v589 = vunpack.c.l.b16 %v278
      %v590 = vunpack.c.h.b16 %v278
      %v591 = vunpack.c.l.b16 %v279
      %v592 = vunpack.c.h.b16 %v279
      %v593 = vunpack.c.l.b16 %v280
      %v594 = vunpack.c.h.b16 %v280
      %v595 = vunpack.c.l.b16 %v281
      %v596 = vunpack.c.h.b16 %v281
      %v597 = vunpack.c.l.b16 %v282
      %v598 = vunpack.c.h.b16 %v282
      %v599 = vunpack.c.l.b16 %v283
      %v600 = vunpack.c.h.b16 %v283
      %v601 = vunpack.c.l.b16 %v284
      %v602 = vunpack.c.h.b16 %v284
      %v603 = vunpack.c.l.b16 %v285
      %v604 = vunpack.c.h.b16 %v285
      %v605 = vunpack.c.l.b16 %v286
      %v606 = vunpack.c.h.b16 %v286
      %v607 = vunpack.c.l.b16 %v287
      %v608 = vunpack.c.h.b16 %v287
      %v609 = vunpack.c.l.b16 %v288
      %v610 = vunpack.c.h.b16 %v288
      %v611 = vunpack.c.l.b16 %v289
      %v612 = vunpack.c.h.b16 %v289
      %v613 = vunpack.c.l.b16 %v290
      %v614 = vunpack.c.h.b16 %v290
      %v615 = vunpack.c.l.b16 %v291
      %v616 = vunpack.c.h.b16 %v291
      %v617 = vunpack.c.l.b16 %v292
      %v618 = vunpack.c.h.b16 %v292
      %v619 = vunpack.c.l.b16 %v293
      %v620 = vunpack.c.h.b16 %v293
      %v621 = vunpack.c.l.b16 %v294
      %v622 = vunpack.c.h.b16 %v294
      %v623 = vunpack.c.l.b16 %v295
      %v624 = vunpack.c.h.b16 %v295
      %v625 = vunpack.c.l.b16 %v296
      %v626 = vunpack.c.h.b16 %v296
      %v627 = vunpack.c.l.b16 %v297
      %v628 = vunpack.c.h.b16 %v297
      %v629 = vunpack.c.l.b16 %v298
      %v630 = vunpack.c.h.b16 %v298
      %v631 = vunpack.c.l.b16 %v299
      %v632 = vunpack.c.h.b16 %v299
      %v633 = vunpack.c.l.b16 %v300
      %v634 = vunpack.c.h.b16 %v300
      %v635 = vunpack.c.l.b16 %v301
      %v636 = vunpack.c.h.b16 %v301
      %v637 = vunpack.c.l.b16 %v302
      %v638 = vunpack.c.h.b16 %v302
      %v639 = vunpack.c.l.b16 %v303
      %v640 = vunpack.c.h.b16 %v303
      %v641 = vunpack.c.l.b16 %v304
      %v642 = vunpack.c.h.b16 %v304
      %v643 = vunpack.c.l.b16 %v305
      %v644 = vunpack.c.h.b16 %v305
      %v645 = vunpack.c.l.b16 %v306
      %v646 = vunpack.c.h.b16 %v306
      %v647 = vunpack.c.l.b16 %v307
      %v648 = vunpack.c.h.b16 %v307
      %v649 = vunpack.c.l.b16 %v308
      %v650 = vunpack.c.h.b16 %v308
      %v651 = vunpack.c.l.b16 %v309
      %v652 = vunpack.c.h.b16 %v309
      %v653 = vunpack.c.l.b16 %v310
      %v654 = vunpack.c.h.b16 %v310
      %v655 = vunpack.c.l.b16 %v311
      %v656 = vunpack.c.h.b16 %v311
      %v657 = vunpack.c.l.b16 %v312
      %v658 = vunpack.c.h.b16 %v312
      %v659 = vunpack.c.l.b16 %v313
      %v660 = vunpack.c.h.b16 %v313
      %v661 = vunpack.c.l.b16 %v314
      %v662 = vunpack.c.h.b16 %v314
      %v663 = vunpack.c.l.b16 %v315
      %v664 = vunpack.c.h.b16 %v315
      %v665 = vunpack.c.l.b16 %v316
      %v666 = vunpack.c.h.b16 %v316
      %v667 = vunpack.c.l.b16 %v317
      %v668 = vunpack.c.h.b16 %v317
      %v669 = vunpack.c.l.b16 %v318
      %v670 = vunpack.c.h.b16 %v318
      %v671 = vunpack.c.l.b16 %v319
      %v672 = vunpack.c.h.b16 %v319
      %v673 = vunpack.c.l.b16 %v320
      %v674 = vunpack.c.h.b16 %v320
      %v675 = vunpack.c.l.b16 %v321
      %v676 = vunpack.c.h.b16 %v321
      %v677 = vunpack.c.l.b16 %v322
      %v678 = vunpack.c.h.b16 %v322
      %v679 = vunpack.c.l.b16 %v323
      %v680 = vunpack.c.h.b16 %v323
      %v681 = vunpack.c.l.b16 %v324
      %v682 = vunpack.c.h.b16 %v324
      %v683 = vunpack.c.l.b16 %v325
      %v684 = vunpack.c.h.b16 %v325
      %v685 = vunpack.c.l.b16 %v326
      %v686 = vunpack.c.h.b16 %v326
      %v687 = vunpack.c.l.b16 %v327
      %v688 = vunpack.c.h.b16 %v327
      %v689 = vunpack.c.l.b16 %v328
      %v690 = vunpack.c.h.b16 %v328
      %v691 = vunpack.c.l.b16 %v329
      %v692 = vunpack.c.h.b16 %v329
      %v693 = vunpack.c.l.b16 %v330
      %v694 = vunpack.c.h.b16 %v330
      %v695 = vunpack.c.l.b16 %v331
      %v696 = vunpack.c.h.b16 %v331
      %v697 = vunpack.c.l.b16 %v332
      %v698 = vunpack.c.h.b16 %v332
      %v699 = vunpack.c.l.b16 %v333
      %v700 = vunpack.c.h.b16 %v333
      %v701 = vunpack.c.l.b16 %v334
      %v702 = vunpack.c.h.b16 %v334
      %v703 = vunpack.c.l.b16 %v335
      %v704 = vunpack.c.h.b16 %v335
      %v705 = vunpack.c.l.b16 %v336
      %v706 = vunpack.c.h.b16 %v336
      %v707 = vunpack.c.l.b16 %v337
      %v708 = vunpack.c.h.b16 %v337
      %v709 = vunpack.c.l.b16 %v338
      %v710 = vunpack.c.h.b16 %v338
      %v711 = vunpack.c.l.b16 %v339
      %v712 = vunpack.c.h.b16 %v339
      %v713 = vunpack.c.l.b16 %v340
      %v714 = vunpack.c.h.b16 %v340
      %v715 = vunpack.c.l.b16 %v341
      %v716 = vunpack.c.h.b16 %v341
      %v717 = vunpack.c.l.b16 %v342
      %v718 = vunpack.c.h.b16 %v342
      %v719 = vunpack.c.l.b16 %v343
      %v720 = vunpack.c.h.b16 %v343
      %v721 = vunpack.c.l.b16 %v344
      %v722 = vunpack.c.h.b16 %v344
      %v723 = vunpack.c.l.b16 %v345
      %v724 = vunpack.c.h.b16 %v345
      %v725 = vunpack.c.l.b16 %v346
      %v726 = vunpack.c.h.b16 %v346
      %v727 = vunpack.c.l.b16 %v347
      %v728 = vunpack.c.h.b16 %v347
      %v729 = vunpack.c.l.b16 %v348
      %v730 = vunpack.c.h.b16 %v348
      %v731 = vunpack.c.l.b16 %v349
      %v732 = vunpack.c.h.b16 %v349
      %v733 = vunpack.c.l.b16 %v350
      %v734 = vunpack.c.h.b16 %v350
      %v735 = vunpack.c.l.b16 %v351
      %v736 = vunpack.c.h.b16 %v351
      %v737 = vunpack.c.l.b16 %v352
      %v738 = vunpack.c.h.b16 %v352
      %v739 = vunpack.c.l.b16 %v353
      %v740 = vunpack.c.h.b16 %v353
      %v741 = vunpack.c.l.b16 %v354
      %v742 = vunpack.c.h.b16 %v354
      %v743 = vunpack.c.l.b16 %v355
      %v744 = vunpack.c.h.b16 %v355
      %v745 = vunpack.c.l.b16 %v356
      %v746 = vunpack.c.h.b16 %v356
      %v747 = vunpack.c.l.b16 %v357
      %v748 = vunpack.c.h.b16 %v357
      %v749 = vunpack.c.l.b16 %v358
      %v750 = vunpack.c.h.b16 %v358
      %v751 = vunpack.c.l.b16 %v359
      %v752 = vunpack.c.h.b16 %v359
      %v753 = vunpack.c.l.b16 %v360
      %v754 = vunpack.c.h.b16 %v360
      %v755 = vunpack.c.l.b16 %v361
      %v756 = vunpack.c.h.b16 %v361
      %v757 = vunpack.c.l.b16 %v362
      %v758 = vunpack.c.h.b16 %v362
      %v759 = vunpack.c.l.b16 %v363
      %v760 = vunpack.c.h.b16 %v363
      %v761 = vunpack.c.l.b16 %v364
      %v762 = vunpack.c.h.b16 %v364
      %v763 = vpack.c.b16 %v511, %v507
      %v764 = vpack.c.b16 %v512, %v508
      %v765 = vpack.c.b16 %v513, %v509
      %v766 = vpack.c.b16 %v514, %v510
      %v767 = vpack.c.b16 %v519, %v515
      %v768 = vpack.c.b16 %v520, %v516
      %v769 = vpack.c.b16 %v521, %v517
      %v770 = vpack.c.b16 %v522, %v518
      %v771 = vpack.c.b16 %v527, %v523
      %v772 = vpack.c.b16 %v528, %v524
      %v773 = vpack.c.b16 %v529, %v525
      %v774 = vpack.c.b16 %v530, %v526
      %v775 = vpack.c.b16 %v535, %v531
      %v776 = vpack.c.b16 %v536, %v532
      %v777 = vpack.c.b16 %v537, %v533
      %v778 = vpack.c.b16 %v538, %v534
      %v779 = vpack.c.b16 %v543, %v539
      %v780 = vpack.c.b16 %v544, %v540
      %v781 = vpack.c.b16 %v545, %v541
      %v782 = vpack.c.b16 %v546, %v542
      %v783 = vpack.c.b16 %v551, %v547
      %v784 = vpack.c.b16 %v552, %v548
      %v785 = vpack.c.b16 %v553, %v549
      %v786 = vpack.c.b16 %v554, %v550
      %v787 = vpack.c.b16 %v559, %v555
      %v788 = vpack.c.b16 %v560, %v556
      %v789 = vpack.c.b16 %v561, %v557
      %v790 = vpack.c.b16 %v562, %v558
      %v791 = vpack.c.b16 %v567, %v563
      %v792 = vpack.c.b16 %v568, %v564
      %v793 = vpack.c.b16 %v569, %v565
      %v794 = vpack.c.b16 %v570, %v566
      %v795 = vpack.c.b16 %v575, %v571
      %v796 = vpack.c.b16 %v576, %v572
      %v797 = vpack.c.b16 %v577, %v573
      %v798 = vpack.c.b16 %v578, %v574
      %v799 = vpack.c.b16 %v583, %v579
      %v800 = vpack.c.b16 %v584, %v580
      %v801 = vpack.c.b16 %v585, %v581
      %v802 = vpack.c.b16 %v586, %v582
      %v803 = vpack.c.b16 %v591, %v587
      %v804 = vpack.c.b16 %v592, %v588
      %v805 = vpack.c.b16 %v593, %v589
      %v806 = vpack.c.b16 %v594, %v590
      %v807 = vpack.c.b16 %v599, %v595
      %v808 = vpack.c.b16 %v600, %v596
      %v809 = vpack.c.b16 %v601, %v597
      %v810 = vpack.c.b16 %v602, %v598
      %v811 = vpack.c.b16 %v607, %v603
      %v812 = vpack.c.b16 %v608, %v604
      %v813 = vpack.c.b16 %v609, %v605
      %v814 = vpack.c.b16 %v610, %v606
      %v815 = vpack.c.b16 %v615, %v611
      %v816 = vpack.c.b16 %v616, %v612
      %v817 = vpack.c.b16 %v617, %v613
      %v818 = vpack.c.b16 %v618, %v614
      %v819 = vpack.c.b16 %v623, %v619
      %v820 = vpack.c.b16 %v624, %v620
      %v821 = vpack.c.b16 %v625, %v621
      %v822 = vpack.c.b16 %v626, %v622
      %v823 = vpack.c.b16 %v631, %v627
      %v824 = vpack.c.b16 %v632, %v628
      %v825 = vpack.c.b16 %v633, %v629
      %v826 = vpack.c.b16 %v634, %v630
      %v827 = vpack.c.b16 %v639, %v635
      %v828 = vpack.c.b16 %v640, %v636
      %v829 = vpack.c.b16 %v641, %v637
      %v830 = vpack.c.b16 %v642, %v638
      %v831 = vpack.c.b16 %v647, %v643
      %v832 = vpack.c.b16 %v648, %v644
      %v833 = vpack.c.b16 %v649, %v645
      %v834 = vpack.c.b16 %v650, %v646
      %v835 = vpack.c.b16 %v655, %v651
      %v836 = vpack.c.b16 %v656, %v652
      %v837 = vpack.c.b16 %v657, %v653
      %v838 = vpack.c.b16 %v658, %v654
      %v839 = vpack.c.b16 %v663, %v659
      %v840 = vpack.c.b16 %v664, %v660
      %v841 = vpack.c.b16 %v665, %v661
      %v842 = vpack.c.b16 %v666, %v662
      %v843 = vpack.c.b16 %v671, %v667
      %v844 = vpack.c.b16 %v672, %v668
      %v845 = vpack.c.b16 %v673, %v669
      %v846 = vpack.c.b16 %v674, %v670
      %v847 = vpack.c.b16 %v679, %v675
      %v848 = vpack.c.b16 %v680, %v676
      %v849 = vpack.c.b16 %v681, %v677
      %v850 = vpack.c.b16 %v682, %v678
      %v851 = vpack.c.b16 %v687, %v683
      %v852 = vpack.c.b16 %v688, %v684
      %v853 = vpack.c.b16 %v689, %v685
      %v854 = vpack.c.b16 %v690, %v686
      %v855 = vpack.c.b16 %v695, %v691
      %v856 = vpack.c.b16 %v696, %v692
      %v857 = vpack.c.b16 %v697, %v693
      %v858 = vpack.c.b16 %v698, %v694
      %v859 = vpack.c.b16 %v703, %v699
      %v860 = vpack.c.b16 %v704, %v700
      %v861 = vpack.c.b16 %v705, %v701
      %v862 = vpack.c.b16 %v706, %v702
      %v863 = vpack.c.b16 %v711, %v707
      %v864 = vpack.c.b16 %v712, %v708
      %v865 = vpack.c.b16 %v713, %v709
      %v866 = vpack.c.b16 %v714, %v710
      %v867 = vpack.c.b16 %v719, %v715
      %v868 = vpack.c.b16 %v720, %v716
      %v869 = vpack.c.b16 %v721, %v717
      %v870 = vpack.c.b16 %v722, %v718
      %v871 = vpack.c.b16 %v727, %v723
      %v872 = vpack.c.b16 %v728, %v724
      %v873 = vpack.c.b16 %v729, %v725
      %v874 = vpack.c.b16 %v730, %v726
      %v875 = vpack.c.b16 %v735, %v731
      %v876 = vpack.c.b16 %v736, %v732
      %v877 = vpack.c.b16 %v737, %v733
      %v878 = vpack.c.b16 %v738, %v734
      %v879 = vpack.c.b16 %v743, %v739
      %v880 = vpack.c.b16 %v744, %v740
      %v881 = vpack.c.b16 %v745, %v741
      %v882 = vpack.c.b16 %v746, %v742
      %v883 = vpack.c.b16 %v751, %v747
      %v884 = vpack.c.b16 %v752, %v748
      %v885 = vpack.c.b16 %v753, %v749
      %v886 = vpack.c.b16 %v754, %v750
      %v887 = vpack.c.b16 %v759, %v755
      %v888 = vpack.c.b16 %v760, %v756
      %v889 = vpack.c.b16 %v761, %v757
      %v890 = vpack.c.b16 %v762, %v758
      %1019 = vmatprep.subr.bf16.mxu0 %v792
      %1020 = vmatpush1.bf16.msra.mxu0 %v791
      %1021 = vmatprep.subr.bf16.mxu0 %v788
      %1022 = vmatpush1.bf16.msra.mxu0 %v787
      %1023 = vmatprep.subr.bf16.mxu0 %v784
      %1024 = vmatpush1.bf16.msra.mxu0 %v783
      %1025 = vmatprep.subr.bf16.mxu0 %v780
      %1026 = vmatpush1.bf16.msra.mxu0 %v779
      %1027 = vmatprep.subr.bf16.mxu0 %v776
      %1028 = vmatpush1.bf16.msra.mxu0 %v775
      %1029 = vmatprep.subr.bf16.mxu0 %v772
      %1030 = vmatpush1.bf16.msra.mxu0 %v771
      %1031 = vmatprep.subr.bf16.mxu0 %v768
      %1032 = vmatpush1.bf16.msra.mxu0 %v767
      %1033 = vmatprep.subr.bf16.mxu0 %v764
      %1034 = vmatpush1.bf16.msra.mxu0 %v763
      %1035 = vmatprep.subr.bf16.mxu0 %v824
      %1036 = vmatpush2.bf16.msra.mxu0 %v823
      %1037 = vmatprep.subr.bf16.mxu0 %v820
      %1038 = vmatpush2.bf16.msra.mxu0 %v819
      %1039 = vmatprep.subr.bf16.mxu0 %v816
      %1040 = vmatpush2.bf16.msra.mxu0 %v815
      %1041 = vmatprep.subr.bf16.mxu0 %v812
      %1042 = vmatpush2.bf16.msra.mxu0 %v811
      %1043 = vmatprep.subr.bf16.mxu0 %v808
      %1044 = vmatpush2.bf16.msra.mxu0 %v807
      %1045 = vmatprep.subr.bf16.mxu0 %v804
      %1046 = vmatpush2.bf16.msra.mxu0 %v803
      %1047 = vmatprep.subr.bf16.mxu0 %v800
      %1048 = vmatpush2.bf16.msra.mxu0 %v799
      %1049 = vmatprep.subr.bf16.mxu0 %v796
      %1050 = vmatpush2.bf16.msra.mxu0 %v795
      %1051 = vmatprep.mubr.bf16.mxu0 %v372
      %1052 = vmatmul.mubr.bf16.gmra.mxu0 %v371
      %v1053 = vpop.f32.mrf.mxu0
      %v1054 = vadd.f32 0.0, %v1053
      %v1055 = vpop.f32.mrf.mxu0
      %v1056 = vadd.f32 0.0, %v1055
      %v1057 = vpop.f32.mrf.mxu0
      %v1058 = vpop.f32.mrf.mxu0
      %1059 = vdwg.mxu0
      %1060 = vmatprep.subr.bf16.mxu0 %v856
      %1061 = vmatpush1.bf16.msra.mxu0 %v855
      %1062 = vmatprep.subr.bf16.mxu0 %v852
      %1063 = vmatpush1.bf16.msra.mxu0 %v851
      %1064 = vmatprep.subr.bf16.mxu0 %v848
      %1065 = vmatpush1.bf16.msra.mxu0 %v847
      %1066 = vmatprep.subr.bf16.mxu0 %v844
      %1067 = vmatpush1.bf16.msra.mxu0 %v843
      %1068 = vmatprep.subr.bf16.mxu0 %v840
      %1069 = vmatpush1.bf16.msra.mxu0 %v839
      %1070 = vmatprep.subr.bf16.mxu0 %v836
      %1071 = vmatpush1.bf16.msra.mxu0 %v835
      %1072 = vmatprep.subr.bf16.mxu0 %v832
      %1073 = vmatpush1.bf16.msra.mxu0 %v831
      %1074 = vmatprep.subr.bf16.mxu0 %v828
      %1075 = vmatpush1.bf16.msra.mxu0 %v827
      %1076 = vmatprep.subr.bf16.mxu0 %v888
      %1077 = vmatpush2.bf16.msra.mxu0 %v887
      %1078 = vmatprep.subr.bf16.mxu0 %v884
      %1079 = vmatpush2.bf16.msra.mxu0 %v883
      %1080 = vmatprep.subr.bf16.mxu0 %v880
      %1081 = vmatpush2.bf16.msra.mxu0 %v879
      %1082 = vmatprep.subr.bf16.mxu0 %v876
      %1083 = vmatpush2.bf16.msra.mxu0 %v875
      %1084 = vmatprep.subr.bf16.mxu0 %v872
      %1085 = vmatpush2.bf16.msra.mxu0 %v871
      %1086 = vmatprep.subr.bf16.mxu0 %v868
      %1087 = vmatpush2.bf16.msra.mxu0 %v867
      %1088 = vmatprep.subr.bf16.mxu0 %v864
      %1089 = vmatpush2.bf16.msra.mxu0 %v863
      %1090 = vmatprep.subr.bf16.mxu0 %v860
      %1091 = vmatpush2.bf16.msra.mxu0 %v859
      %1092 = vmatprep.mubr.bf16.mxu0 %v374
      %1093 = vmatmul.mubr.bf16.gmra.mxu0 %v373
      %v1094 = vpop.f32.mrf.mxu0
      %v1095 = vadd.f32 %v1054, %v1094
      %v1096 = vpop.f32.mrf.mxu0
      %v1097 = vadd.f32 %v1056, %v1096
      %v1098 = vpop.f32.mrf.mxu0
      %v1099 = vpop.f32.mrf.mxu0
      %1100 = vdwg.mxu0
      %1101 = vmatprep.subr.bf16.mxu0 %v794
      %1102 = vmatpush1.bf16.msra.mxu0 %v793
      %1103 = vmatprep.subr.bf16.mxu0 %v790
      %1104 = vmatpush1.bf16.msra.mxu0 %v789
      %1105 = vmatprep.subr.bf16.mxu0 %v786
      %1106 = vmatpush1.bf16.msra.mxu0 %v785
      %1107 = vmatprep.subr.bf16.mxu0 %v782
      %1108 = vmatpush1.bf16.msra.mxu0 %v781
      %1109 = vmatprep.subr.bf16.mxu0 %v778
      %1110 = vmatpush1.bf16.msra.mxu0 %v777
      %1111 = vmatprep.subr.bf16.mxu0 %v774
      %1112 = vmatpush1.bf16.msra.mxu0 %v773
      %1113 = vmatprep.subr.bf16.mxu0 %v770
      %1114 = vmatpush1.bf16.msra.mxu0 %v769
      %1115 = vmatprep.subr.bf16.mxu0 %v766
      %1116 = vmatpush1.bf16.msra.mxu0 %v765
      %1117 = vmatprep.subr.bf16.mxu0 %v826
      %1118 = vmatpush2.bf16.msra.mxu0 %v825
      %1119 = vmatprep.subr.bf16.mxu0 %v822
      %1120 = vmatpush2.bf16.msra.mxu0 %v821
      %1121 = vmatprep.subr.bf16.mxu0 %v818
      %1122 = vmatpush2.bf16.msra.mxu0 %v817
      %1123 = vmatprep.subr.bf16.mxu0 %v814
      %1124 = vmatpush2.bf16.msra.mxu0 %v813
      %1125 = vmatprep.subr.bf16.mxu0 %v810
      %1126 = vmatpush2.bf16.msra.mxu0 %v809
      %1127 = vmatprep.subr.bf16.mxu0 %v806
      %1128 = vmatpush2.bf16.msra.mxu0 %v805
      %1129 = vmatprep.subr.bf16.mxu0 %v802
      %1130 = vmatpush2.bf16.msra.mxu0 %v801
      %1131 = vmatprep.subr.bf16.mxu0 %v798
      %1132 = vmatpush2.bf16.msra.mxu0 %v797
      %1133 = vmatprep.mubr.bf16.mxu0 %v372
      %1134 = vmatmul.mubr.bf16.gmra.mxu0 %v371
      %v1135 = vpop.f32.mrf.mxu0
      %v1136 = vadd.f32 0.0, %v1135
      %v1137 = vpop.f32.mrf.mxu0
      %v1138 = vadd.f32 0.0, %v1137
      %v1139 = vpop.f32.mrf.mxu0
      %v1140 = vpop.f32.mrf.mxu0
      %1141 = vdwg.mxu0
      %1142 = vmatprep.subr.bf16.mxu0 %v858
      %1143 = vmatpush1.bf16.msra.mxu0 %v857
      %1144 = vmatprep.subr.bf16.mxu0 %v854
      %1145 = vmatpush1.bf16.msra.mxu0 %v853
      %1146 = vmatprep.subr.bf16.mxu0 %v850
      %1147 = vmatpush1.bf16.msra.mxu0 %v849
      %1148 = vmatprep.subr.bf16.mxu0 %v846
      %1149 = vmatpush1.bf16.msra.mxu0 %v845
      %1150 = vmatprep.subr.bf16.mxu0 %v842
      %1151 = vmatpush1.bf16.msra.mxu0 %v841
      %1152 = vmatprep.subr.bf16.mxu0 %v838
      %1153 = vmatpush1.bf16.msra.mxu0 %v837
      %1154 = vmatprep.subr.bf16.mxu0 %v834
      %1155 = vmatpush1.bf16.msra.mxu0 %v833
      %1156 = vmatprep.subr.bf16.mxu0 %v830
      %1157 = vmatpush1.bf16.msra.mxu0 %v829
      %1158 = vmatprep.subr.bf16.mxu0 %v890
      %1159 = vmatpush2.bf16.msra.mxu0 %v889
      %1160 = vmatprep.subr.bf16.mxu0 %v886
      %1161 = vmatpush2.bf16.msra.mxu0 %v885
      %1162 = vmatprep.subr.bf16.mxu0 %v882
      %1163 = vmatpush2.bf16.msra.mxu0 %v881
      %1164 = vmatprep.subr.bf16.mxu0 %v878
      %1165 = vmatpush2.bf16.msra.mxu0 %v877
      %1166 = vmatprep.subr.bf16.mxu0 %v874
      %1167 = vmatpush2.bf16.msra.mxu0 %v873
      %1168 = vmatprep.subr.bf16.mxu0 %v870
      %1169 = vmatpush2.bf16.msra.mxu0 %v869
      %1170 = vmatprep.subr.bf16.mxu0 %v866
      %1171 = vmatpush2.bf16.msra.mxu0 %v865
      %1172 = vmatprep.subr.bf16.mxu0 %v862
      %1173 = vmatpush2.bf16.msra.mxu0 %v861
      %1174 = vmatprep.mubr.bf16.mxu0 %v374
      %1175 = vmatmul.mubr.bf16.gmra.mxu0 %v373
      %v1176 = vpop.f32.mrf.mxu0
      %v1177 = vadd.f32 %v1136, %v1176
      %v1178 = vpop.f32.mrf.mxu0
      %v1179 = vadd.f32 %v1138, %v1178
      %v1180 = vpop.f32.mrf.mxu0
      %v1181 = vpop.f32.mrf.mxu0
      %1182 = vdwg.mxu0
      %v1183 = vadd.f32 %v228, %v1095
      %v1184 = vadd.f32 %v229, %v1097
      %v1185 = vadd.f32 %v230, %v1177
      %v1186 = vadd.f32 %v231, %v1179
      %1187 = vst [vmem:[#allocation2] sm:$0xff] %v1183
      %1188 = vst [vmem:[#allocation2 + $0x8] sm:$0xff] %v1184
      %1189 = vst [vmem:[#allocation2 + $0x10] sm:$0xff] %v1185
      %1190 = vst [vmem:[#allocation2 + $0x18] sm:$0xff] %v1186
      %p1191 = scmp.eq.s32.totalorder %s20, 2
      // Predicated region
      $region41: #{wiener_hammerstein_forward.2} parent=35 // pred_check
        %p1192 = pneg %p1191
      $region42: #{wiener_hammerstein_forward.2} parent=35 // pred_check_branch
        %1194 = sbr.rel (%p1192) target = $region44
      $region43: #{wiener_hammerstein_forward.2} parent=35 // pred_region
        %v1195 = vld [vmem:[%s2] sm:$0xff]
        %v1196 = vld [vmem:[#allocation2] sm:$0xff]
        %v1197 = vld [vmem:[#allocation2 + $0x8] sm:$0xff]
        %v1198 = vld [vmem:[#allocation2 + $0x10] sm:$0xff]
        %v1199 = vld [vmem:[#allocation2 + $0x18] sm:$0xff]
        %1201 = vset.pattern.permute.xlu0 0
        %1202 = vperm.xlu0 %1201, %v1195
        %v1203 = vpop.permute.xlu0 %1202
        %v1205 = vmul.f32 %v1203, %v1196
        %v1206 = vmul.f32 %v1203, %v1197
        %v1207 = vmul.f32 %v1203, %v1198
        %v1208 = vmul.f32 %v1203, %v1199
        %v1209 = vtanh.pop %v1205
        %v1210 = vtanh.pop %v1206
        %v1211 = vtanh.pop %v1207
        %v1212 = vtanh.pop %v1208
        %v1213 = vld [vmem:[%s3] sm:$0xff]
        %1215 = vset.pattern.permute.xlu0 0
        %1216 = vperm.xlu0 %1215, %v1213
        %v1217 = vpop.permute.xlu0 %1216
        %v1219 = vmul.f32 %v1209, %v1217
        %v1220 = vmul.f32 %v1210, %v1217
        %v1221 = vmul.f32 %v1211, %v1217
        %v1222 = vmul.f32 %v1212, %v1217
        %v1223 = vpack.c.bf16 %v1219, %v1219
        %v1224 = vpack.c.bf16 %v1220, %v1220
        %v1225 = vpack.c.bf16 %v1221, %v1221
        %v1226 = vpack.c.bf16 %v1222, %v1222
        %v1231 = vunpack.c.l.b16 %v1223
        %v1232 = vunpack.c.l.b16 %v1224
        %v1233 = vunpack.c.l.b16 %v1225
        %v1234 = vunpack.c.l.b16 %v1226
        %v1235 = vpack.c.b16 %v1232, %v1231
        %v1236 = vpack.c.b16 %v1234, %v1233
        %1239 = vst [vmem:[%s218] sm:$0xff] %v1235
        %1240 = vst [vmem:[%s218 + $0x8] sm:$0xff] %v1236
      $region44: #{wiener_hammerstein_forward.2} parent=35 // pred_fallthru
        _
      %s1241 = smul.u32 4, %s19
      %p1242 = scmp.lt.s32.totalorder %s1241, 15
      %s1243 = scalar_select %p1242, %s1241, 15
      %s1244 = smul.addr %s1243, 4
      %s1245 = scalar_lea.vmem %s4, %s1244
      // Predicated region
      $region45: #{wiener_hammerstein_forward.2} parent=35 // pred_check
        %p1246 = pneg %p136
      $region46: #{wiener_hammerstein_forward.2} parent=35 // pred_check_branch
        %1248 = sbr.rel (%p1246) target = $region48
      $region47: #{wiener_hammerstein_forward.2} parent=35 // pred_region
        %s1249 = smul.u32 4, %s19
      $region48: #{wiener_hammerstein_forward.2} parent=35 // pred_fallthru
        _
    $region36: #{wiener_hammerstein_forward.2} parent=5 // pred_fallthru
      _
    %p1250 = scmp.le.s32.totalorder 2, %s10
    // Predicated region
    $region49: #{wiener_hammerstein_forward.2} parent=5 // pred_check
      %p1251 = pneg %p1250
    $region50: #{wiener_hammerstein_forward.2} parent=5 // pred_check_branch
      %1253 = sbr.rel (%p1251) target = $region52
    $region51: #{wiener_hammerstein_forward.2} parent=5 // pred_region
      %s1254 = ssub.s32 %s10, 2
      // Predicated region
      $region53: #{wiener_hammerstein_forward.2} parent=51 // pred_check
        %p1255 = pneg %p142
      $region54: #{wiener_hammerstein_forward.2} parent=51 // pred_check_branch
        %1257 = sbr.rel (%p1255) target = $region56
      $region55: #{wiener_hammerstein_forward.2} parent=51 // pred_region
        %s1258 = smul.u32 4, %s21
        %p1259 = scmp.lt.s32.totalorder %s1258, 15
        %s1260 = scalar_select %p1259, %s1258, 15
        %s1261 = smul.addr %s1260, 4
        %s1262 = scalar_lea.vmem %s4, %s1261
      $region56: #{wiener_hammerstein_forward.2} parent=51 // pred_fallthru
        _
    $region52: #{wiener_hammerstein_forward.2} parent=5 // pred_fallthru
      _
  $region6: #{wiener_hammerstein_forward.2} parent=0 // loop_footer
    %s14 = sadd.s32 1, %s10
  $region7: #{wiener_hammerstein_forward.2} parent=0 // loop_footer_branch
    %9 = sbr.rel target = $region3
  $region8: #{wiener_hammerstein_forward.2} parent=0 // loop_exit
    _

</llo_original>
